<compile_context>
chip_gen: v6e
topology: v6e:2x2x1
jax: 0.10.0
libtpu: 0.0.40
codegen_flags: <defaults>
</compile_context>

<pallas_src>
import jax
import jax.numpy as jnp
from jax.experimental import pallas as pl
from jax.experimental.pallas import tpu as pltpu


def _clamp01(x):
    # torch: max(zeros, min(ones, x))
    return jnp.maximum(jnp.zeros_like(x), jnp.minimum(jnp.ones_like(x), x))


def tl_nn1_kernel(scalars_ref, x1_ref, x2_ref, x3_ref, t_ref, b_ref, w_ref, out_ref):
    """One grid step over a (tn, L) slab of packed rows (L = PACK*T lanes).

    scalars_ref : SMEM (7,)        [beta1..beta4, softmax(A4)[0..2]]
    x*_ref      : VMEM (tn, L)     lane-dense packed series inputs
    t_ref,b_ref : VMEM (3, L)      per-branch t/b rows, lane-tiled PACK times
    w_ref       : VMEM (3, L, PACK)block-diagonal softmax(A_i) reduce matrices
    out_ref     : VMEM (tn, PACK)  one activation per original sample
    """
    xs = (x1_ref, x2_ref, x3_ref)
    acc = None
    for i in range(3):
        t_row = t_ref[pl.ds(i, 1), :]                       # (1, L)
        b_row = b_ref[pl.ds(i, 1), :]                       # (1, L)
        s = jax.nn.sigmoid(xs[i][...] * t_row - b_row)      # (tn, L)  VPU + EUP
        # Per-sample weighted reduction on the MXU:
        #   sums[p, j] = sum_k softmax(A_i)[k] * s[sample p*PACK+j, k]
        sums = jnp.dot(s, w_ref[i],
                       preferred_element_type=jnp.float32,
                       precision=jax.lax.Precision.HIGHEST)  # (tn, PACK)
        # beta - sum(a*(1-s)) == (beta - 1) + sum(a*s)   (softmax row sums to 1,
        # error ~1e-7 in f32 — documented rewrite).
        act = _clamp01((scalars_ref[i] - 1.0) + sums)
        contrib = scalars_ref[4 + i] * act
        acc = contrib if acc is None else acc + contrib
    out_ref[...] = _clamp01((scalars_ref[3] - 1.0) + acc)


def _vmem_limit_bytes():
    """Generation-aware scoped-VMEM request (v5e/v6e: 128 MiB, v7x: 64 MiB)."""
    cap = 128 * 1024 * 1024
    try:
        cap = int(pltpu.get_tpu_info().vmem_capacity_bytes)
    except Exception:
        pass
    return max(16 * 1024 * 1024, min(cap // 2, 64 * 1024 * 1024))


def _choose_row_tile(n_rows, lane_width, vmem_limit):
    """Largest multiple-of-8 packed-row tile within ~65% of the VMEM limit."""
    lane_padded = ((lane_width + 127) // 128) * 128
    # 3 input streams x 2 pipeline buffers + output (lane-padded) x 2 buffers
    # + ~2 lane-wide f32 temporaries for the live branch.
    bytes_per_row = (3 * 2 * lane_padded + 2 * 128 + 2 * lane_padded) * 4
    budget = (vmem_limit * 13) // 20
    tn = budget // bytes_per_row
    tn = max(8, min(16384, (tn // 8) * 8))
    tn = min(tn, ((n_rows + 7) // 8) * 8)   # no need to exceed the row count
    return int(tn)


def tl_nn1_forward(x1, x2, x3, params, *, max_rows_per_tile=None):
    N, T = x1.shape
    # Pack PACK = 128 // T samples per lane-dense row when T divides 128;
    # otherwise fall back to one sample per row (lane width = T).
    pack = 128 // T if (T <= 128 and 128 % T == 0) else 1
    L = pack * T

    t = params["t"].astype(jnp.float32)                              # (3, T)
    b = params["b"].astype(jnp.float32)                              # (3, T)
    # Parameter-only softmaxes hoisted out of the per-tile hot path.
    a_sm = jax.nn.softmax(params["A"].astype(jnp.float32), axis=1)   # (3, T)
    a4_sm = jax.nn.softmax(params["A4"].astype(jnp.float32), axis=1)  # (1, 3)
    betas = params["betas"].astype(jnp.float32)                       # (4,)
    scalars = jnp.concatenate([betas, a4_sm.reshape(-1)])             # (7,)

    # Lane-tiled t/b rows and block-diagonal reduce matrices
    # W[i, j*T + k, j] = softmax(A_i)[k].
    t_tiled = jnp.tile(t, (1, pack))                                  # (3, L)
    b_tiled = jnp.tile(b, (1, pack))                                  # (3, L)
    eye = jnp.eye(pack, dtype=jnp.float32)
    w = (a_sm[:, None, :, None] * eye[None, :, None, :]).reshape(3, L, pack)

    # Pad only to the packing granularity (< pack rows); copy-free when aligned.
    n_pad = ((N + pack - 1) // pack) * pack
    n_rows = n_pad // pack

    def prep(x):
        x = x.astype(jnp.float32)
        if n_pad != N:
            x = jnp.pad(x, ((0, n_pad - N), (0, 0)))
        return x.reshape(n_rows, L)   # row-major merge of minor dims -> free

    x1p, x2p, x3p = prep(x1), prep(x2), prep(x3)

    vmem_limit = _vmem_limit_bytes()
    tn = _choose_row_tile(n_rows, L, vmem_limit)
    if max_rows_per_tile is not None:
        tn = max(8, min(tn, (max_rows_per_tile // 8) * 8))
    grid_n = pl.cdiv(n_rows, tn)   # last block may be ragged; Pallas masks it

    cost = pl.CostEstimate(
        flops=int(3 * n_rows * (2 * L + 2 * L * pack) + 8 * n_rows * pack),
        transcendentals=int(3 * n_rows * L),
        bytes_accessed=int((3 * n_rows * L + n_rows * pack
                            + 6 * L + 3 * L * pack + 7) * 4),
    )

    out = pl.pallas_call(
        tl_nn1_kernel,
        out_shape=jax.ShapeDtypeStruct((n_rows, pack), jnp.float32),
        grid=(grid_n,),
        in_specs=[
            pl.BlockSpec(memory_space=pltpu.MemorySpace.SMEM),   # betas + softmax(A4)
            pl.BlockSpec((tn, L), lambda i: (i, 0)),             # x1 packed tile
            pl.BlockSpec((tn, L), lambda i: (i, 0)),             # x2 packed tile
            pl.BlockSpec((tn, L), lambda i: (i, 0)),             # x3 packed tile
            pl.BlockSpec((3, L), lambda i: (0, 0)),              # t rows (resident)
            pl.BlockSpec((3, L), lambda i: (0, 0)),              # b rows (resident)
            pl.BlockSpec((3, L, pack), lambda i: (0, 0, 0)),     # A reduce matrices
        ],
        out_specs=pl.BlockSpec((tn, pack), lambda i: (i, 0)),
        compiler_params=pltpu.CompilerParams(
            dimension_semantics=("parallel",),
            vmem_limit_bytes=vmem_limit,
        ),
        cost_estimate=cost,
    )(scalars, x1p, x2p, x3p, t_tiled, b_tiled, w)
    return out.reshape(-1)[:N]


def tl_nn1_reference(x1, x2, x3, params):
    """Pure-JAX reference mirroring the PyTorch forward exactly."""
    t, b, A, A4, betas = (params["t"], params["b"], params["A"],
                          params["A4"], params["betas"])
    acts = []
    for i, x in enumerate((x1, x2, x3)):
        r_asgm = jax.nn.sigmoid(x * t[i:i + 1] - b[i:i + 1])
        a_sm = jax.nn.softmax(A[i:i + 1], axis=1)
        wb = betas[i] - jnp.sum(a_sm * (1.0 - r_asgm), axis=1)
        acts.append(_clamp01(wb).reshape(-1, 1))
    r4 = jnp.concatenate(acts, axis=1)
    a4_sm = jax.nn.softmax(A4, axis=1)
    wb4 = betas[3] - jnp.sum(a4_sm * (1.0 - r4), axis=1)
    return _clamp01(wb4).reshape(-1)


if __name__ == "__main__":
    key = jax.random.PRNGKey(0)
    T = 16
    ks = jax.random.split(key, 16)

    # Deterministic synthetic parameters (shapes from TL_NN1.__init__):
    #   t1/t2/t3, b1/b2/b3, A1/A2/A3: (1, T) -> stacked into (3, T)
    #   A4: (1, 3); beta1..beta4: scalars -> (4,)
    # (the *_2 parameters in __init__ are unused in forward, so omitted)
    params = {
        "t": jax.random.normal(ks[3], (3, T), jnp.float32) * 0.1,
        "b": jax.random.normal(ks[4], (3, T), jnp.float32) * 0.1,
        "A": jax.random.uniform(ks[5], (3, T), jnp.float32) * 0.1,
        "A4": jax.random.uniform(ks[6], (1, 3), jnp.float32) * 0.1,
        "betas": jnp.full((4,), 0.5, jnp.float32),
    }

    def check(n, k0, k1, k2, **kw):
        a = jax.random.normal(ks[k0], (n, T), jnp.float32)
        c = jax.random.normal(ks[k1], (n, T), jnp.float32)
        d = jax.random.normal(ks[k2], (n, T), jnp.float32)
        out = jax.block_until_ready(tl_nn1_forward(a, c, d, params, **kw))
        ref = jax.block_until_ready(tl_nn1_reference(a, c, d, params))
        assert out.shape == (n,), out.shape
        assert jnp.allclose(out, ref, atol=1e-5, rtol=1e-5), (out, ref)

    # Case 1: pack-aligned batch (single packed row, copy-free repack).
    check(8, 0, 1, 2)
    # Case 2: ragged batch (pads < pack rows, slice-back path).
    check(37, 7, 8, 9)
    # Case 3: forced small tile -> multi-step grid with a ragged final block.
    check(300, 10, 11, 12, max_rows_per_tile=8)

    print("KERNEL_OK")
</pallas_src>

<mosaic_0001>
module attributes {stable_mosaic.version = 11 : i64} {
  func.func @tl_nn1_kernel(%arg0: i32, %arg1: memref<7xf32, #tpu.memory_space<smem>>, %arg2: memref<8x128xf32, #tpu.memory_space<vmem>>, %arg3: memref<8x128xf32, #tpu.memory_space<vmem>>, %arg4: memref<8x128xf32, #tpu.memory_space<vmem>>, %arg5: memref<3x128xf32, #tpu.memory_space<vmem>>, %arg6: memref<3x128xf32, #tpu.memory_space<vmem>>, %arg7: memref<3x128x8xf32, #tpu.memory_space<vmem>>, %arg8: memref<8x8xf32, #tpu.memory_space<vmem>>) attributes {dimension_semantics = [#tpu.dimension_semantics<parallel>], iteration_bounds = array<i64: 1>, scalar_prefetch = 0 : i64, scratch_operands = 0 : i64, tpu.core_type = #tpu.core_type<tc>, window_params = [{transform_indices = @transform_0, window_bounds = array<i64: 7>}, {transform_indices = @transform_1, window_bounds = array<i64: 8, 128>}, {transform_indices = @transform_2, window_bounds = array<i64: 8, 128>}, {transform_indices = @transform_3, window_bounds = array<i64: 8, 128>}, {pipeline_mode = #tpu.pipeline_mode<synchronous>, transform_indices = @transform_4, window_bounds = array<i64: 3, 128>}, {pipeline_mode = #tpu.pipeline_mode<synchronous>, transform_indices = @transform_5, window_bounds = array<i64: 3, 128>}, {pipeline_mode = #tpu.pipeline_mode<synchronous>, transform_indices = @transform_6, window_bounds = array<i64: 3, 128, 8>}, {transform_indices = @transform_7, window_bounds = array<i64: 8, 8>}]} {
    %c0 = arith.constant 0 : index
    %c0_0 = arith.constant 0 : index
    %0 = vector.load %arg5[%c0, %c0_0] : memref<3x128xf32, #tpu.memory_space<vmem>>, vector<1x128xf32>
    %c0_1 = arith.constant 0 : index
    %c0_2 = arith.constant 0 : index
    %1 = vector.load %arg6[%c0_1, %c0_2] : memref<3x128xf32, #tpu.memory_space<vmem>>, vector<1x128xf32>
    %c0_3 = arith.constant 0 : index
    %c0_4 = arith.constant 0 : index
    %2 = vector.load %arg2[%c0_3, %c0_4] : memref<8x128xf32, #tpu.memory_space<vmem>>, vector<8x128xf32>
    %3 = vector.broadcast %0 : vector<1x128xf32> to vector<8x128xf32>
    %4 = arith.mulf %2, %3 : vector<8x128xf32>
    %5 = vector.broadcast %1 : vector<1x128xf32> to vector<8x128xf32>
    %6 = arith.subf %4, %5 : vector<8x128xf32>
    %7 = arith.negf %6 : vector<8x128xf32>
    %8 = math.exp %7 : vector<8x128xf32>
    %cst = arith.constant 1.000000e+00 : f32
    %9 = vector.broadcast %cst : f32 to vector<8x128xf32>
    %10 = arith.addf %9, %8 : vector<8x128xf32>
    %11 = arith.divf %9, %10 : vector<8x128xf32>
    %c0_5 = arith.constant 0 : index
    %c0_6 = arith.constant 0 : index
    %c0_7 = arith.constant 0 : index
    %12 = vector.load %arg7[%c0_5, %c0_6, %c0_7] : memref<3x128x8xf32, #tpu.memory_space<vmem>>, vector<1x128x8xf32>
    %13 = vector.shape_cast %12 : vector<1x128x8xf32> to vector<128x8xf32>
    %cst_8 = arith.constant dense<0.000000e+00> : vector<8x8xf32>
    %14 = tpu.matmul %11, %13, %cst_8 {dimension_numbers = #tpu.dot_dimension_numbers<[1], [0], [0], [1], [0, 0, 1, 1], [], []>, precision = #tpu.contract_precision<fp32>} : vector<8x128xf32>, vector<128x8xf32>, vector<8x8xf32> -> vector<8x8xf32>
    %c0_9 = arith.constant 0 : index
    %15 = memref.load %arg1[%c0_9] : memref<7xf32, #tpu.memory_space<smem>>
    %cst_10 = arith.constant 1.000000e+00 : f32
    %16 = arith.subf %15, %cst_10 : f32
    %17 = vector.broadcast %16 : f32 to vector<8x8xf32>
    %18 = arith.addf %17, %14 : vector<8x8xf32>
    %cst_11 = arith.constant 0.000000e+00 : f32
    %19 = vector.broadcast %cst_11 : f32 to vector<8x8xf32>
    %cst_12 = arith.constant 1.000000e+00 : f32
    %20 = vector.broadcast %cst_12 : f32 to vector<8x8xf32>
    %21 = arith.minimumf %20, %18 : vector<8x8xf32>
    %22 = arith.maximumf %19, %21 : vector<8x8xf32>
    %c4 = arith.constant 4 : index
    %23 = memref.load %arg1[%c4] : memref<7xf32, #tpu.memory_space<smem>>
    %24 = vector.broadcast %23 : f32 to vector<8x8xf32>
    %25 = arith.mulf %24, %22 : vector<8x8xf32>
    %c1 = arith.constant 1 : index
    %c0_13 = arith.constant 0 : index
    %26 = vector.load %arg5[%c1, %c0_13] : memref<3x128xf32, #tpu.memory_space<vmem>>, vector<1x128xf32>
    %c1_14 = arith.constant 1 : index
    %c0_15 = arith.constant 0 : index
    %27 = vector.load %arg6[%c1_14, %c0_15] : memref<3x128xf32, #tpu.memory_space<vmem>>, vector<1x128xf32>
    %c0_16 = arith.constant 0 : index
    %c0_17 = arith.constant 0 : index
    %28 = vector.load %arg3[%c0_16, %c0_17] : memref<8x128xf32, #tpu.memory_space<vmem>>, vector<8x128xf32>
    %29 = vector.broadcast %26 : vector<1x128xf32> to vector<8x128xf32>
    %30 = arith.mulf %28, %29 : vector<8x128xf32>
    %31 = vector.broadcast %27 : vector<1x128xf32> to vector<8x128xf32>
    %32 = arith.subf %30, %31 : vector<8x128xf32>
    %33 = arith.negf %32 : vector<8x128xf32>
    %34 = math.exp %33 : vector<8x128xf32>
    %cst_18 = arith.constant 1.000000e+00 : f32
    %35 = vector.broadcast %cst_18 : f32 to vector<8x128xf32>
    %36 = arith.addf %35, %34 : vector<8x128xf32>
    %37 = arith.divf %35, %36 : vector<8x128xf32>
    %c1_19 = arith.constant 1 : index
    %c0_20 = arith.constant 0 : index
    %c0_21 = arith.constant 0 : index
    %38 = vector.load %arg7[%c1_19, %c0_20, %c0_21] : memref<3x128x8xf32, #tpu.memory_space<vmem>>, vector<1x128x8xf32>
    %39 = vector.shape_cast %38 : vector<1x128x8xf32> to vector<128x8xf32>
    %cst_22 = arith.constant dense<0.000000e+00> : vector<8x8xf32>
    %40 = tpu.matmul %37, %39, %cst_22 {dimension_numbers = #tpu.dot_dimension_numbers<[1], [0], [0], [1], [0, 0, 1, 1], [], []>, precision = #tpu.contract_precision<fp32>} : vector<8x128xf32>, vector<128x8xf32>, vector<8x8xf32> -> vector<8x8xf32>
    %c1_23 = arith.constant 1 : index
    %41 = memref.load %arg1[%c1_23] : memref<7xf32, #tpu.memory_space<smem>>
    %cst_24 = arith.constant 1.000000e+00 : f32
    %42 = arith.subf %41, %cst_24 : f32
    %43 = vector.broadcast %42 : f32 to vector<8x8xf32>
    %44 = arith.addf %43, %40 : vector<8x8xf32>
    %cst_25 = arith.constant 0.000000e+00 : f32
    %45 = vector.broadcast %cst_25 : f32 to vector<8x8xf32>
    %cst_26 = arith.constant 1.000000e+00 : f32
    %46 = vector.broadcast %cst_26 : f32 to vector<8x8xf32>
    %47 = arith.minimumf %46, %44 : vector<8x8xf32>
    %48 = arith.maximumf %45, %47 : vector<8x8xf32>
    %c5 = arith.constant 5 : index
    %49 = memref.load %arg1[%c5] : memref<7xf32, #tpu.memory_space<smem>>
    %50 = vector.broadcast %49 : f32 to vector<8x8xf32>
    %51 = arith.mulf %50, %48 : vector<8x8xf32>
    %52 = arith.addf %25, %51 : vector<8x8xf32>
    %c2 = arith.constant 2 : index
    %c0_27 = arith.constant 0 : index
    %53 = vector.load %arg5[%c2, %c0_27] : memref<3x128xf32, #tpu.memory_space<vmem>>, vector<1x128xf32>
    %c2_28 = arith.constant 2 : index
    %c0_29 = arith.constant 0 : index
    %54 = vector.load %arg6[%c2_28, %c0_29] : memref<3x128xf32, #tpu.memory_space<vmem>>, vector<1x128xf32>
    %c0_30 = arith.constant 0 : index
    %c0_31 = arith.constant 0 : index
    %55 = vector.load %arg4[%c0_30, %c0_31] : memref<8x128xf32, #tpu.memory_space<vmem>>, vector<8x128xf32>
    %56 = vector.broadcast %53 : vector<1x128xf32> to vector<8x128xf32>
    %57 = arith.mulf %55, %56 : vector<8x128xf32>
    %58 = vector.broadcast %54 : vector<1x128xf32> to vector<8x128xf32>
    %59 = arith.subf %57, %58 : vector<8x128xf32>
    %60 = arith.negf %59 : vector<8x128xf32>
    %61 = math.exp %60 : vector<8x128xf32>
    %cst_32 = arith.constant 1.000000e+00 : f32
    %62 = vector.broadcast %cst_32 : f32 to vector<8x128xf32>
    %63 = arith.addf %62, %61 : vector<8x128xf32>
    %64 = arith.divf %62, %63 : vector<8x128xf32>
    %c2_33 = arith.constant 2 : index
    %c0_34 = arith.constant 0 : index
    %c0_35 = arith.constant 0 : index
    %65 = vector.load %arg7[%c2_33, %c0_34, %c0_35] : memref<3x128x8xf32, #tpu.memory_space<vmem>>, vector<1x128x8xf32>
    %66 = vector.shape_cast %65 : vector<1x128x8xf32> to vector<128x8xf32>
    %cst_36 = arith.constant dense<0.000000e+00> : vector<8x8xf32>
    %67 = tpu.matmul %64, %66, %cst_36 {dimension_numbers = #tpu.dot_dimension_numbers<[1], [0], [0], [1], [0, 0, 1, 1], [], []>, precision = #tpu.contract_precision<fp32>} : vector<8x128xf32>, vector<128x8xf32>, vector<8x8xf32> -> vector<8x8xf32>
    %c2_37 = arith.constant 2 : index
    %68 = memref.load %arg1[%c2_37] : memref<7xf32, #tpu.memory_space<smem>>
    %cst_38 = arith.constant 1.000000e+00 : f32
    %69 = arith.subf %68, %cst_38 : f32
    %70 = vector.broadcast %69 : f32 to vector<8x8xf32>
    %71 = arith.addf %70, %67 : vector<8x8xf32>
    %cst_39 = arith.constant 0.000000e+00 : f32
    %72 = vector.broadcast %cst_39 : f32 to vector<8x8xf32>
    %cst_40 = arith.constant 1.000000e+00 : f32
    %73 = vector.broadcast %cst_40 : f32 to vector<8x8xf32>
    %74 = arith.minimumf %73, %71 : vector<8x8xf32>
    %75 = arith.maximumf %72, %74 : vector<8x8xf32>
    %c6 = arith.constant 6 : index
    %76 = memref.load %arg1[%c6] : memref<7xf32, #tpu.memory_space<smem>>
    %77 = vector.broadcast %76 : f32 to vector<8x8xf32>
    %78 = arith.mulf %77, %75 : vector<8x8xf32>
    %79 = arith.addf %52, %78 : vector<8x8xf32>
    %c3 = arith.constant 3 : index
    %80 = memref.load %arg1[%c3] : memref<7xf32, #tpu.memory_space<smem>>
    %cst_41 = arith.constant 1.000000e+00 : f32
    %81 = arith.subf %80, %cst_41 : f32
    %82 = vector.broadcast %81 : f32 to vector<8x8xf32>
    %83 = arith.addf %82, %79 : vector<8x8xf32>
    %cst_42 = arith.constant 0.000000e+00 : f32
    %84 = vector.broadcast %cst_42 : f32 to vector<8x8xf32>
    %cst_43 = arith.constant 1.000000e+00 : f32
    %85 = vector.broadcast %cst_43 : f32 to vector<8x8xf32>
    %86 = arith.minimumf %85, %83 : vector<8x8xf32>
    %87 = arith.maximumf %84, %86 : vector<8x8xf32>
    %c0_44 = arith.constant 0 : index
    %c0_45 = arith.constant 0 : index
    %88 = vector.load %arg8[%c0_44, %c0_45] : memref<8x8xf32, #tpu.memory_space<vmem>>, vector<8x8xf32>
    tpu.vector_store %arg8[%c0_44, %c0_45], %87 {strides = array<i32>} : memref<8x8xf32, #tpu.memory_space<vmem>>, vector<8x8xf32>,
    return
  }
  func.func @transform_0(%arg0: i32) -> i32 {
    %c0_i32 = arith.constant 0 : i32
    %c0_i32_0 = arith.constant 0 : i32
    return %c0_i32 : i32
  }
  func.func @transform_1(%arg0: i32) -> (i32, i32) {
    %c0_i32 = arith.constant 0 : i32
    %c0_i32_0 = arith.constant 0 : i32
    return %arg0, %c0_i32 : i32, i32
  }
  func.func @transform_2(%arg0: i32) -> (i32, i32) {
    %c0_i32 = arith.constant 0 : i32
    %c0_i32_0 = arith.constant 0 : i32
    return %arg0, %c0_i32 : i32, i32
  }
  func.func @transform_3(%arg0: i32) -> (i32, i32) {
    %c0_i32 = arith.constant 0 : i32
    %c0_i32_0 = arith.constant 0 : i32
    return %arg0, %c0_i32 : i32, i32
  }
  func.func @transform_4(%arg0: i32) -> (i32, i32) {
    %c0_i32 = arith.constant 0 : i32
    %c0_i32_0 = arith.constant 0 : i32
    %c0_i32_1 = arith.constant 0 : i32
    return %c0_i32, %c0_i32_0 : i32, i32
  }
  func.func @transform_5(%arg0: i32) -> (i32, i32) {
    %c0_i32 = arith.constant 0 : i32
    %c0_i32_0 = arith.constant 0 : i32
    %c0_i32_1 = arith.constant 0 : i32
    return %c0_i32, %c0_i32_0 : i32, i32
  }
  func.func @transform_6(%arg0: i32) -> (i32, i32, i32) {
    %c0_i32 = arith.constant 0 : i32
    %c0_i32_0 = arith.constant 0 : i32
    %c0_i32_1 = arith.constant 0 : i32
    %c0_i32_2 = arith.constant 0 : i32
    return %c0_i32, %c0_i32_0, %c0_i32_1 : i32, i32, i32
  }
  func.func @transform_7(%arg0: i32) -> (i32, i32) {
    %c0_i32 = arith.constant 0 : i32
    %c0_i32_0 = arith.constant 0 : i32
    return %arg0, %c0_i32 : i32, i32
  }
}

</mosaic_0001>

<llo_original>
// kernel: tpu_custom_call.1
$region0: #{tpu_custom_call.1}
  #allocation0 [shape = 'u32[]', space=smem, size = 0x4, offset = 0x4, fixed_abs, tag = 'smem constant byte address 0x4 - core index']
  #allocation1 [shape = 'u32[144,128]{1,0:T(1,128)}', space=vmem, size = 0x12000, scoped, tag = 'internal scratch']
  %s0 = inlined_call_operand.vmem [shape: f32[7], index: 0, kind: input, shape index: {}]
  %s1 = inlined_call_operand.vmem [shape: f32[1,128], index: 1, kind: input, shape index: {}]
  %s2 = inlined_call_operand.vmem [shape: f32[1,128], index: 2, kind: input, shape index: {}]
  %s3 = inlined_call_operand.vmem [shape: f32[1,128], index: 3, kind: input, shape index: {}]
  %s4 = inlined_call_operand.vmem [shape: f32[3,128], index: 4, kind: input, shape index: {}]
  %s5 = inlined_call_operand.vmem [shape: f32[3,128], index: 5, kind: input, shape index: {}]
  %s6 = inlined_call_operand.vmem [shape: f32[3,128,8], index: 6, kind: input, shape index: {}]
  %s7 = inlined_call_operand.hbm [shape: f32[1,8], index: 7, kind: output, shape index: {}]
  %s8 = sld [smem:[#allocation0]]
  $region42: #{tpu_custom_call.1} parent=0
    _
  %s10 = ssub.s32 1, %s8
  %s11 = scalar_select 0, %s10, %s8
  $region1: #{tpu_custom_call.1} parent=0
    #allocation2 [shape = 'u8[512]{0}', space=smem, size = 0x200, scoped, tag = 'input window, operand 0, single buffered']
    #allocation3 [shape = 's32[1]{0}', space=sflag, size = 0x4, scoped, tag = 'scoped memory for tpu_custom_call.1']
    #allocation4 [shape = 's32[1]{0}', space=sflag, size = 0x4, scoped, tag = 'scoped memory for tpu_custom_call.1']
    #allocation5 [shape = 'u8[4096]{0}', space=vmem, size = 0x1000, scoped, tag = 'output window, operand 0, single buffered']
    %12 = vsyncpa [#allocation4], 0
    %13 = vsyncpa [#allocation3], 0
    // Predicated region
    $region2: #{tpu_custom_call.1} parent=1 // pred_check
      _
    $region3: #{tpu_custom_call.1} parent=1 // pred_check_branch
      %15 = sbr.rel (0) target = $region5
    $region4: #{tpu_custom_call.1} parent=1 // pred_region
      %s17 = ssub.s32 16, 16
      %18 = vsyncadd [#allocation4], %s17
      %s20 = sshll.u32 %s0, 4
      %s21 = int_to_ptr.vmem [resolvable:$true] %s20
      %23 = dma.vmem_to_smem %s21, 16, [#allocation2], [#allocation4]
    $region5: #{tpu_custom_call.1} parent=1 // pred_fallthru
      _
    // Predicated region
    $region6: #{tpu_custom_call.1} parent=1 // pred_check
      _
    $region7: #{tpu_custom_call.1} parent=1 // pred_check_branch
      %25 = sbr.rel (0) target = $region9
    $region8: #{tpu_custom_call.1} parent=1 // pred_region
      _
    $region9: #{tpu_custom_call.1} parent=1 // pred_fallthru
      _
    // Predicated region
    $region10: #{tpu_custom_call.1} parent=1 // pred_check
      _
    $region11: #{tpu_custom_call.1} parent=1 // pred_check_branch
      %27 = sbr.rel (0) target = $region13
    $region12: #{tpu_custom_call.1} parent=1 // pred_region
      _
    $region13: #{tpu_custom_call.1} parent=1 // pred_fallthru
      _
    // Predicated region
    $region14: #{tpu_custom_call.1} parent=1 // pred_check
      _
    $region15: #{tpu_custom_call.1} parent=1 // pred_check_branch
      %29 = sbr.rel (0) target = $region17
    $region16: #{tpu_custom_call.1} parent=1 // pred_region
      _
    $region17: #{tpu_custom_call.1} parent=1 // pred_fallthru
      _
    // Predicated region
    $region18: #{tpu_custom_call.1} parent=1 // pred_check
      _
    $region19: #{tpu_custom_call.1} parent=1 // pred_check_branch
      %31 = sbr.rel (0) target = $region21
    $region20: #{tpu_custom_call.1} parent=1 // pred_region
      _
    $region21: #{tpu_custom_call.1} parent=1 // pred_fallthru
      _
    // Predicated region
    $region22: #{tpu_custom_call.1} parent=1 // pred_check
      _
    $region23: #{tpu_custom_call.1} parent=1 // pred_check_branch
      %33 = sbr.rel (0) target = $region25
    $region24: #{tpu_custom_call.1} parent=1 // pred_region
      _
    $region25: #{tpu_custom_call.1} parent=1 // pred_fallthru
      _
    // Predicated region
    $region26: #{tpu_custom_call.1} parent=1 // pred_check
      _
    $region27: #{tpu_custom_call.1} parent=1 // pred_check_branch
      %35 = sbr.rel (0) target = $region29
    $region28: #{tpu_custom_call.1} parent=1 // pred_region
      _
    $region29: #{tpu_custom_call.1} parent=1 // pred_fallthru
      _
    // Predicated region
    $region30: #{tpu_custom_call.1} parent=1 // pred_check
      _
    $region31: #{tpu_custom_call.1} parent=1 // pred_check_branch
      %37 = sbr.rel (0) target = $region33
    $region32: #{tpu_custom_call.1} parent=1 // pred_region
      %38 = dma.done [#allocation4], 16
    $region33: #{tpu_custom_call.1} parent=1 // pred_fallthru
      _
    %39 = sfence
    %v40 = vld [vmem:[%s4] sm:$0x1]
    %v41 = vld [vmem:[%s5] sm:$0x1]
    %v42 = vld [vmem:[%s1] sm:$0xff]
    %v43 = vlaneseq
    %v44 = vshrl.u32 %v43, 7
    %v45 = vsub.s32 0, %v44
    %v46 = vrot.slane %v40, %v45
    %v47 = vmul.f32 %v42, %v46
    %v48 = vlaneseq
    %v49 = vshrl.u32 %v48, 7
    %v50 = vsub.s32 0, %v49
    %v51 = vrot.slane %v41, %v50
    %v52 = vsub.f32 %v47, %v51
    %v53 = vxor.u32 %v52, 2147483648
    %v54 = vmul.f32 %v53, 1.442695
    %v55 = vpow.pop %v54
    %v56 = vadd.f32 %v55, 1.0
    %v57 = vrcp.pop %v56
    %v58 = vmul.f32 1.0, %v57
    %v59 = vld [vmem:[%s6] sm:$0xff]
    %v60 = vld [vmem:[%s6 + $0x8] sm:$0xff]
    %v61 = vld [vmem:[%s6 + $0x10] sm:$0xff]
    %v62 = vld [vmem:[%s6 + $0x18] sm:$0xff]
    %v63 = vld [vmem:[%s6 + $0x20] sm:$0xff]
    %v64 = vld [vmem:[%s6 + $0x28] sm:$0xff]
    %v65 = vld [vmem:[%s6 + $0x30] sm:$0xff]
    %v66 = vld [vmem:[%s6 + $0x38] sm:$0xff]
    %v67 = vld [vmem:[%s6 + $0x40] sm:$0xff]
    %v68 = vld [vmem:[%s6 + $0x48] sm:$0xff]
    %v69 = vld [vmem:[%s6 + $0x50] sm:$0xff]
    %v70 = vld [vmem:[%s6 + $0x58] sm:$0xff]
    %v71 = vld [vmem:[%s6 + $0x60] sm:$0xff]
    %v72 = vld [vmem:[%s6 + $0x68] sm:$0xff]
    %v73 = vld [vmem:[%s6 + $0x70] sm:$0xff]
    %v74 = vld [vmem:[%s6 + $0x78] sm:$0xff]
    %75 = vmatprep.subr.mxu0 0.0
    %v76 = vand.u32 %v74, 4294901760
    %77 = vmatpush1.msra.mxu0 %v76
    %78 = vmatprep.subr.mxu0 0.0
    %v79 = vand.u32 %v73, 4294901760
    %80 = vmatpush1.msra.mxu0 %v79
    %81 = vmatprep.subr.mxu0 0.0
    %v82 = vand.u32 %v72, 4294901760
    %83 = vmatpush1.msra.mxu0 %v82
    %84 = vmatprep.subr.mxu0 0.0
    %v85 = vand.u32 %v71, 4294901760
    %86 = vmatpush1.msra.mxu0 %v85
    %87 = vmatprep.subr.mxu0 0.0
    %v88 = vand.u32 %v70, 4294901760
    %89 = vmatpush1.msra.mxu0 %v88
    %90 = vmatprep.subr.mxu0 0.0
    %v91 = vand.u32 %v69, 4294901760
    %92 = vmatpush1.msra.mxu0 %v91
    %93 = vmatprep.subr.mxu0 0.0
    %v94 = vand.u32 %v68, 4294901760
    %95 = vmatpush1.msra.mxu0 %v94
    %96 = vmatprep.subr.mxu0 0.0
    %v97 = vand.u32 %v67, 4294901760
    %98 = vmatpush1.msra.mxu0 %v97
    %99 = vmatprep.subr.mxu0 0.0
    %v100 = vand.u32 %v66, 4294901760
    %101 = vmatpush1.msra.mxu0 %v100
    %102 = vmatprep.subr.mxu0 0.0
    %v103 = vand.u32 %v65, 4294901760
    %104 = vmatpush1.msra.mxu0 %v103
    %105 = vmatprep.subr.mxu0 0.0
    %v106 = vand.u32 %v64, 4294901760
    %107 = vmatpush1.msra.mxu0 %v106
    %108 = vmatprep.subr.mxu0 0.0
    %v109 = vand.u32 %v63, 4294901760
    %110 = vmatpush1.msra.mxu0 %v109
    %111 = vmatprep.subr.mxu0 0.0
    %v112 = vand.u32 %v62, 4294901760
    %113 = vmatpush1.msra.mxu0 %v112
    %114 = vmatprep.subr.mxu0 0.0
    %v115 = vand.u32 %v61, 4294901760
    %116 = vmatpush1.msra.mxu0 %v115
    %117 = vmatprep.subr.mxu0 0.0
    %v118 = vand.u32 %v60, 4294901760
    %119 = vmatpush1.msra.mxu0 %v118
    %120 = vmatprep.subr.mxu0 0.0
    %v121 = vand.u32 %v59, 4294901760
    %122 = vmatpush1.msra.mxu0 %v121
    %123 = vmatprep.subr.mxu0 0.0
    %124 = vmatpush2.msra.mxu0 0.0
    %125 = vmatprep.subr.mxu0 0.0
    %126 = vmatpush2.msra.mxu0 0.0
    %127 = vmatprep.subr.mxu0 0.0
    %128 = vmatpush2.msra.mxu0 0.0
    %129 = vmatprep.subr.mxu0 0.0
    %130 = vmatpush2.msra.mxu0 0.0
    %131 = vmatprep.subr.mxu0 0.0
    %132 = vmatpush2.msra.mxu0 0.0
    %133 = vmatprep.subr.mxu0 0.0
    %134 = vmatpush2.msra.mxu0 0.0
    %135 = vmatprep.subr.mxu0 0.0
    %136 = vmatpush2.msra.mxu0 0.0
    %137 = vmatprep.subr.mxu0 0.0
    %138 = vmatpush2.msra.mxu0 0.0
    %139 = vmatprep.subr.mxu0 0.0
    %140 = vmatpush2.msra.mxu0 0.0
    %141 = vmatprep.subr.mxu0 0.0
    %142 = vmatpush2.msra.mxu0 0.0
    %143 = vmatprep.subr.mxu0 0.0
    %144 = vmatpush2.msra.mxu0 0.0
    %145 = vmatprep.subr.mxu0 0.0
    %146 = vmatpush2.msra.mxu0 0.0
    %147 = vmatprep.subr.mxu0 0.0
    %148 = vmatpush2.msra.mxu0 0.0
    %149 = vmatprep.subr.mxu0 0.0
    %150 = vmatpush2.msra.mxu0 0.0
    %151 = vmatprep.subr.mxu0 0.0
    %152 = vmatpush2.msra.mxu0 0.0
    %153 = vmatprep.subr.mxu0 0.0
    %154 = vmatpush2.msra.mxu0 0.0
    %155 = vmatprep.mubr.f32.mxu0 0.0
    %v156 = vand.u32 %v58, 4294901760
    %v157 = vsub.f32 %v58, %v156
    %v158 = vand.u32 %v157, 4294901760
    %v159 = vsub.f32 %v157, %v158
    %v160 = vand.u32 %v159, 4294901760
    %161 = vmatmul.mubr.f32.gmra.mxu0 %v160
    %v162 = vpop.f32.mrf.mxu0
    %v163 = vadd.f32 0.0, %v162
    %v164 = vpop.f32.mrf.mxu0
    %165 = vdwg.mxu0
    %166 = vmatprep.subr.mxu0 0.0
    %v167 = vand.u32 %v74, 4294901760
    %v168 = vsub.f32 %v74, %v167
    %v169 = vand.u32 %v168, 4294901760
    %v170 = vsub.f32 %v168, %v169
    %v171 = vand.u32 %v170, 4294901760
    %172 = vmatpush1.msra.mxu0 %v171
    %173 = vmatprep.subr.mxu0 0.0
    %v174 = vand.u32 %v73, 4294901760
    %v175 = vsub.f32 %v73, %v174
    %v176 = vand.u32 %v175, 4294901760
    %v177 = vsub.f32 %v175, %v176
    %v178 = vand.u32 %v177, 4294901760
    %179 = vmatpush1.msra.mxu0 %v178
    %180 = vmatprep.subr.mxu0 0.0
    %v181 = vand.u32 %v72, 4294901760
    %v182 = vsub.f32 %v72, %v181
    %v183 = vand.u32 %v182, 4294901760
    %v184 = vsub.f32 %v182, %v183
    %v185 = vand.u32 %v184, 4294901760
    %186 = vmatpush1.msra.mxu0 %v185
    %187 = vmatprep.subr.mxu0 0.0
    %v188 = vand.u32 %v71, 4294901760
    %v189 = vsub.f32 %v71, %v188
    %v190 = vand.u32 %v189, 4294901760
    %v191 = vsub.f32 %v189, %v190
    %v192 = vand.u32 %v191, 4294901760
    %193 = vmatpush1.msra.mxu0 %v192
    %194 = vmatprep.subr.mxu0 0.0
    %v195 = vand.u32 %v70, 4294901760
    %v196 = vsub.f32 %v70, %v195
    %v197 = vand.u32 %v196, 4294901760
    %v198 = vsub.f32 %v196, %v197
    %v199 = vand.u32 %v198, 4294901760
    %200 = vmatpush1.msra.mxu0 %v199
    %201 = vmatprep.subr.mxu0 0.0
    %v202 = vand.u32 %v69, 4294901760
    %v203 = vsub.f32 %v69, %v202
    %v204 = vand.u32 %v203, 4294901760
    %v205 = vsub.f32 %v203, %v204
    %v206 = vand.u32 %v205, 4294901760
    %207 = vmatpush1.msra.mxu0 %v206
    %208 = vmatprep.subr.mxu0 0.0
    %v209 = vand.u32 %v68, 4294901760
    %v210 = vsub.f32 %v68, %v209
    %v211 = vand.u32 %v210, 4294901760
    %v212 = vsub.f32 %v210, %v211
    %v213 = vand.u32 %v212, 4294901760
    %214 = vmatpush1.msra.mxu0 %v213
    %215 = vmatprep.subr.mxu0 0.0
    %v216 = vand.u32 %v67, 4294901760
    %v217 = vsub.f32 %v67, %v216
    %v218 = vand.u32 %v217, 4294901760
    %v219 = vsub.f32 %v217, %v218
    %v220 = vand.u32 %v219, 4294901760
    %221 = vmatpush1.msra.mxu0 %v220
    %222 = vmatprep.subr.mxu0 0.0
    %v223 = vand.u32 %v66, 4294901760
    %v224 = vsub.f32 %v66, %v223
    %v225 = vand.u32 %v224, 4294901760
    %v226 = vsub.f32 %v224, %v225
    %v227 = vand.u32 %v226, 4294901760
    %228 = vmatpush1.msra.mxu0 %v227
    %229 = vmatprep.subr.mxu0 0.0
    %v230 = vand.u32 %v65, 4294901760
    %v231 = vsub.f32 %v65, %v230
    %v232 = vand.u32 %v231, 4294901760
    %v233 = vsub.f32 %v231, %v232
    %v234 = vand.u32 %v233, 4294901760
    %235 = vmatpush1.msra.mxu0 %v234
    %236 = vmatprep.subr.mxu0 0.0
    %v237 = vand.u32 %v64, 4294901760
    %v238 = vsub.f32 %v64, %v237
    %v239 = vand.u32 %v238, 4294901760
    %v240 = vsub.f32 %v238, %v239
    %v241 = vand.u32 %v240, 4294901760
    %242 = vmatpush1.msra.mxu0 %v241
    %243 = vmatprep.subr.mxu0 0.0
    %v244 = vand.u32 %v63, 4294901760
    %v245 = vsub.f32 %v63, %v244
    %v246 = vand.u32 %v245, 4294901760
    %v247 = vsub.f32 %v245, %v246
    %v248 = vand.u32 %v247, 4294901760
    %249 = vmatpush1.msra.mxu0 %v248
    %250 = vmatprep.subr.mxu0 0.0
    %v251 = vand.u32 %v62, 4294901760
    %v252 = vsub.f32 %v62, %v251
    %v253 = vand.u32 %v252, 4294901760
    %v254 = vsub.f32 %v252, %v253
    %v255 = vand.u32 %v254, 4294901760
    %256 = vmatpush1.msra.mxu0 %v255
    %257 = vmatprep.subr.mxu0 0.0
    %v258 = vand.u32 %v61, 4294901760
    %v259 = vsub.f32 %v61, %v258
    %v260 = vand.u32 %v259, 4294901760
    %v261 = vsub.f32 %v259, %v260
    %v262 = vand.u32 %v261, 4294901760
    %263 = vmatpush1.msra.mxu0 %v262
    %264 = vmatprep.subr.mxu0 0.0
    %v265 = vand.u32 %v60, 4294901760
    %v266 = vsub.f32 %v60, %v265
    %v267 = vand.u32 %v266, 4294901760
    %v268 = vsub.f32 %v266, %v267
    %v269 = vand.u32 %v268, 4294901760
    %270 = vmatpush1.msra.mxu0 %v269
    %271 = vmatprep.subr.mxu0 0.0
    %v272 = vand.u32 %v59, 4294901760
    %v273 = vsub.f32 %v59, %v272
    %v274 = vand.u32 %v273, 4294901760
    %v275 = vsub.f32 %v273, %v274
    %v276 = vand.u32 %v275, 4294901760
    %277 = vmatpush1.msra.mxu0 %v276
    %278 = vmatprep.subr.mxu0 0.0
    %279 = vmatpush2.msra.mxu0 0.0
    %280 = vmatprep.subr.mxu0 0.0
    %281 = vmatpush2.msra.mxu0 0.0
    %282 = vmatprep.subr.mxu0 0.0
    %283 = vmatpush2.msra.mxu0 0.0
    %284 = vmatprep.subr.mxu0 0.0
    %285 = vmatpush2.msra.mxu0 0.0
    %286 = vmatprep.subr.mxu0 0.0
    %287 = vmatpush2.msra.mxu0 0.0
    %288 = vmatprep.subr.mxu0 0.0
    %289 = vmatpush2.msra.mxu0 0.0
    %290 = vmatprep.subr.mxu0 0.0
    %291 = vmatpush2.msra.mxu0 0.0
    %292 = vmatprep.subr.mxu0 0.0
    %293 = vmatpush2.msra.mxu0 0.0
    %294 = vmatprep.subr.mxu0 0.0
    %295 = vmatpush2.msra.mxu0 0.0
    %296 = vmatprep.subr.mxu0 0.0
    %297 = vmatpush2.msra.mxu0 0.0
    %298 = vmatprep.subr.mxu0 0.0
    %299 = vmatpush2.msra.mxu0 0.0
    %300 = vmatprep.subr.mxu0 0.0
    %301 = vmatpush2.msra.mxu0 0.0
    %302 = vmatprep.subr.mxu0 0.0
    %303 = vmatpush2.msra.mxu0 0.0
    %304 = vmatprep.subr.mxu0 0.0
    %305 = vmatpush2.msra.mxu0 0.0
    %306 = vmatprep.subr.mxu0 0.0
    %307 = vmatpush2.msra.mxu0 0.0
    %308 = vmatprep.subr.mxu0 0.0
    %309 = vmatpush2.msra.mxu0 0.0
    %310 = vmatprep.mubr.f32.mxu0 0.0
    %v311 = vand.u32 %v58, 4294901760
    %312 = vmatmul.mubr.f32.gmra.mxu0 %v311
    %v313 = vpop.f32.mrf.mxu0
    %v314 = vadd.f32 %v163, %v313
    %v315 = vpop.f32.mrf.mxu0
    %316 = vdwg.mxu0
    %317 = vmatprep.subr.mxu0 0.0
    %v318 = vand.u32 %v74, 4294901760
    %v319 = vsub.f32 %v74, %v318
    %320 = vmatpush1.msra.mxu0 %v319
    %321 = vmatprep.subr.mxu0 0.0
    %v322 = vand.u32 %v73, 4294901760
    %v323 = vsub.f32 %v73, %v322
    %324 = vmatpush1.msra.mxu0 %v323
    %325 = vmatprep.subr.mxu0 0.0
    %v326 = vand.u32 %v72, 4294901760
    %v327 = vsub.f32 %v72, %v326
    %328 = vmatpush1.msra.mxu0 %v327
    %329 = vmatprep.subr.mxu0 0.0
    %v330 = vand.u32 %v71, 4294901760
    %v331 = vsub.f32 %v71, %v330
    %332 = vmatpush1.msra.mxu0 %v331
    %333 = vmatprep.subr.mxu0 0.0
    %v334 = vand.u32 %v70, 4294901760
    %v335 = vsub.f32 %v70, %v334
    %336 = vmatpush1.msra.mxu0 %v335
    %337 = vmatprep.subr.mxu0 0.0
    %v338 = vand.u32 %v69, 4294901760
    %v339 = vsub.f32 %v69, %v338
    %340 = vmatpush1.msra.mxu0 %v339
    %341 = vmatprep.subr.mxu0 0.0
    %v342 = vand.u32 %v68, 4294901760
    %v343 = vsub.f32 %v68, %v342
    %344 = vmatpush1.msra.mxu0 %v343
    %345 = vmatprep.subr.mxu0 0.0
    %v346 = vand.u32 %v67, 4294901760
    %v347 = vsub.f32 %v67, %v346
    %348 = vmatpush1.msra.mxu0 %v347
    %349 = vmatprep.subr.mxu0 0.0
    %v350 = vand.u32 %v66, 4294901760
    %v351 = vsub.f32 %v66, %v350
    %352 = vmatpush1.msra.mxu0 %v351
    %353 = vmatprep.subr.mxu0 0.0
    %v354 = vand.u32 %v65, 4294901760
    %v355 = vsub.f32 %v65, %v354
    %356 = vmatpush1.msra.mxu0 %v355
    %357 = vmatprep.subr.mxu0 0.0
    %v358 = vand.u32 %v64, 4294901760
    %v359 = vsub.f32 %v64, %v358
    %360 = vmatpush1.msra.mxu0 %v359
    %361 = vmatprep.subr.mxu0 0.0
    %v362 = vand.u32 %v63, 4294901760
    %v363 = vsub.f32 %v63, %v362
    %364 = vmatpush1.msra.mxu0 %v363
    %365 = vmatprep.subr.mxu0 0.0
    %v366 = vand.u32 %v62, 4294901760
    %v367 = vsub.f32 %v62, %v366
    %368 = vmatpush1.msra.mxu0 %v367
    %369 = vmatprep.subr.mxu0 0.0
    %v370 = vand.u32 %v61, 4294901760
    %v371 = vsub.f32 %v61, %v370
    %372 = vmatpush1.msra.mxu0 %v371
    %373 = vmatprep.subr.mxu0 0.0
    %v374 = vand.u32 %v60, 4294901760
    %v375 = vsub.f32 %v60, %v374
    %376 = vmatpush1.msra.mxu0 %v375
    %377 = vmatprep.subr.mxu0 0.0
    %v378 = vand.u32 %v59, 4294901760
    %v379 = vsub.f32 %v59, %v378
    %380 = vmatpush1.msra.mxu0 %v379
    %381 = vmatprep.subr.mxu0 0.0
    %382 = vmatpush2.msra.mxu0 0.0
    %383 = vmatprep.subr.mxu0 0.0
    %384 = vmatpush2.msra.mxu0 0.0
    %385 = vmatprep.subr.mxu0 0.0
    %386 = vmatpush2.msra.mxu0 0.0
    %387 = vmatprep.subr.mxu0 0.0
    %388 = vmatpush2.msra.mxu0 0.0
    %389 = vmatprep.subr.mxu0 0.0
    %390 = vmatpush2.msra.mxu0 0.0
    %391 = vmatprep.subr.mxu0 0.0
    %392 = vmatpush2.msra.mxu0 0.0
    %393 = vmatprep.subr.mxu0 0.0
    %394 = vmatpush2.msra.mxu0 0.0
    %395 = vmatprep.subr.mxu0 0.0
    %396 = vmatpush2.msra.mxu0 0.0
    %397 = vmatprep.subr.mxu0 0.0
    %398 = vmatpush2.msra.mxu0 0.0
    %399 = vmatprep.subr.mxu0 0.0
    %400 = vmatpush2.msra.mxu0 0.0
    %401 = vmatprep.subr.mxu0 0.0
    %402 = vmatpush2.msra.mxu0 0.0
    %403 = vmatprep.subr.mxu0 0.0
    %404 = vmatpush2.msra.mxu0 0.0
    %405 = vmatprep.subr.mxu0 0.0
    %406 = vmatpush2.msra.mxu0 0.0
    %407 = vmatprep.subr.mxu0 0.0
    %408 = vmatpush2.msra.mxu0 0.0
    %409 = vmatprep.subr.mxu0 0.0
    %410 = vmatpush2.msra.mxu0 0.0
    %411 = vmatprep.subr.mxu0 0.0
    %412 = vmatpush2.msra.mxu0 0.0
    %413 = vmatprep.mubr.f32.mxu0 0.0
    %v414 = vand.u32 %v58, 4294901760
    %v415 = vsub.f32 %v58, %v414
    %416 = vmatmul.mubr.f32.gmra.mxu0 %v415
    %v417 = vpop.f32.mrf.mxu0
    %v418 = vadd.f32 %v314, %v417
    %v419 = vpop.f32.mrf.mxu0
    %420 = vdwg.mxu0
    %421 = vmatprep.subr.mxu0 0.0
    %v422 = vand.u32 %v74, 4294901760
    %423 = vmatpush1.msra.mxu0 %v422
    %424 = vmatprep.subr.mxu0 0.0
    %v425 = vand.u32 %v73, 4294901760
    %426 = vmatpush1.msra.mxu0 %v425
    %427 = vmatprep.subr.mxu0 0.0
    %v428 = vand.u32 %v72, 4294901760
    %429 = vmatpush1.msra.mxu0 %v428
    %430 = vmatprep.subr.mxu0 0.0
    %v431 = vand.u32 %v71, 4294901760
    %432 = vmatpush1.msra.mxu0 %v431
    %433 = vmatprep.subr.mxu0 0.0
    %v434 = vand.u32 %v70, 4294901760
    %435 = vmatpush1.msra.mxu0 %v434
    %436 = vmatprep.subr.mxu0 0.0
    %v437 = vand.u32 %v69, 4294901760
    %438 = vmatpush1.msra.mxu0 %v437
    %439 = vmatprep.subr.mxu0 0.0
    %v440 = vand.u32 %v68, 4294901760
    %441 = vmatpush1.msra.mxu0 %v440
    %442 = vmatprep.subr.mxu0 0.0
    %v443 = vand.u32 %v67, 4294901760
    %444 = vmatpush1.msra.mxu0 %v443
    %445 = vmatprep.subr.mxu0 0.0
    %v446 = vand.u32 %v66, 4294901760
    %447 = vmatpush1.msra.mxu0 %v446
    %448 = vmatprep.subr.mxu0 0.0
    %v449 = vand.u32 %v65, 4294901760
    %450 = vmatpush1.msra.mxu0 %v449
    %451 = vmatprep.subr.mxu0 0.0
    %v452 = vand.u32 %v64, 4294901760
    %453 = vmatpush1.msra.mxu0 %v452
    %454 = vmatprep.subr.mxu0 0.0
    %v455 = vand.u32 %v63, 4294901760
    %456 = vmatpush1.msra.mxu0 %v455
    %457 = vmatprep.subr.mxu0 0.0
    %v458 = vand.u32 %v62, 4294901760
    %459 = vmatpush1.msra.mxu0 %v458
    %460 = vmatprep.subr.mxu0 0.0
    %v461 = vand.u32 %v61, 4294901760
    %462 = vmatpush1.msra.mxu0 %v461
    %463 = vmatprep.subr.mxu0 0.0
    %v464 = vand.u32 %v60, 4294901760
    %465 = vmatpush1.msra.mxu0 %v464
    %466 = vmatprep.subr.mxu0 0.0
    %v467 = vand.u32 %v59, 4294901760
    %468 = vmatpush1.msra.mxu0 %v467
    %469 = vmatprep.subr.mxu0 0.0
    %470 = vmatpush2.msra.mxu0 0.0
    %471 = vmatprep.subr.mxu0 0.0
    %472 = vmatpush2.msra.mxu0 0.0
    %473 = vmatprep.subr.mxu0 0.0
    %474 = vmatpush2.msra.mxu0 0.0
    %475 = vmatprep.subr.mxu0 0.0
    %476 = vmatpush2.msra.mxu0 0.0
    %477 = vmatprep.subr.mxu0 0.0
    %478 = vmatpush2.msra.mxu0 0.0
    %479 = vmatprep.subr.mxu0 0.0
    %480 = vmatpush2.msra.mxu0 0.0
    %481 = vmatprep.subr.mxu0 0.0
    %482 = vmatpush2.msra.mxu0 0.0
    %483 = vmatprep.subr.mxu0 0.0
    %484 = vmatpush2.msra.mxu0 0.0
    %485 = vmatprep.subr.mxu0 0.0
    %486 = vmatpush2.msra.mxu0 0.0
    %487 = vmatprep.subr.mxu0 0.0
    %488 = vmatpush2.msra.mxu0 0.0
    %489 = vmatprep.subr.mxu0 0.0
    %490 = vmatpush2.msra.mxu0 0.0
    %491 = vmatprep.subr.mxu0 0.0
    %492 = vmatpush2.msra.mxu0 0.0
    %493 = vmatprep.subr.mxu0 0.0
    %494 = vmatpush2.msra.mxu0 0.0
    %495 = vmatprep.subr.mxu0 0.0
    %496 = vmatpush2.msra.mxu0 0.0
    %497 = vmatprep.subr.mxu0 0.0
    %498 = vmatpush2.msra.mxu0 0.0
    %499 = vmatprep.subr.mxu0 0.0
    %500 = vmatpush2.msra.mxu0 0.0
    %501 = vmatprep.mubr.f32.mxu0 0.0
    %v502 = vand.u32 %v58, 4294901760
    %v503 = vsub.f32 %v58, %v502
    %v504 = vand.u32 %v503, 4294901760
    %505 = vmatmul.mubr.f32.gmra.mxu0 %v504
    %v506 = vpop.f32.mrf.mxu0
    %v507 = vadd.f32 %v418, %v506
    %v508 = vpop.f32.mrf.mxu0
    %509 = vdwg.mxu0
    %510 = vmatprep.subr.mxu0 0.0
    %v511 = vand.u32 %v74, 4294901760
    %v512 = vsub.f32 %v74, %v511
    %v513 = vand.u32 %v512, 4294901760
    %514 = vmatpush1.msra.mxu0 %v513
    %515 = vmatprep.subr.mxu0 0.0
    %v516 = vand.u32 %v73, 4294901760
    %v517 = vsub.f32 %v73, %v516
    %v518 = vand.u32 %v517, 4294901760
    %519 = vmatpush1.msra.mxu0 %v518
    %520 = vmatprep.subr.mxu0 0.0
    %v521 = vand.u32 %v72, 4294901760
    %v522 = vsub.f32 %v72, %v521
    %v523 = vand.u32 %v522, 4294901760
    %524 = vmatpush1.msra.mxu0 %v523
    %525 = vmatprep.subr.mxu0 0.0
    %v526 = vand.u32 %v71, 4294901760
    %v527 = vsub.f32 %v71, %v526
    %v528 = vand.u32 %v527, 4294901760
    %529 = vmatpush1.msra.mxu0 %v528
    %530 = vmatprep.subr.mxu0 0.0
    %v531 = vand.u32 %v70, 4294901760
    %v532 = vsub.f32 %v70, %v531
    %v533 = vand.u32 %v532, 4294901760
    %534 = vmatpush1.msra.mxu0 %v533
    %535 = vmatprep.subr.mxu0 0.0
    %v536 = vand.u32 %v69, 4294901760
    %v537 = vsub.f32 %v69, %v536
    %v538 = vand.u32 %v537, 4294901760
    %539 = vmatpush1.msra.mxu0 %v538
    %540 = vmatprep.subr.mxu0 0.0
    %v541 = vand.u32 %v68, 4294901760
    %v542 = vsub.f32 %v68, %v541
    %v543 = vand.u32 %v542, 4294901760
    %544 = vmatpush1.msra.mxu0 %v543
    %545 = vmatprep.subr.mxu0 0.0
    %v546 = vand.u32 %v67, 4294901760
    %v547 = vsub.f32 %v67, %v546
    %v548 = vand.u32 %v547, 4294901760
    %549 = vmatpush1.msra.mxu0 %v548
    %550 = vmatprep.subr.mxu0 0.0
    %v551 = vand.u32 %v66, 4294901760
    %v552 = vsub.f32 %v66, %v551
    %v553 = vand.u32 %v552, 4294901760
    %554 = vmatpush1.msra.mxu0 %v553
    %555 = vmatprep.subr.mxu0 0.0
    %v556 = vand.u32 %v65, 4294901760
    %v557 = vsub.f32 %v65, %v556
    %v558 = vand.u32 %v557, 4294901760
    %559 = vmatpush1.msra.mxu0 %v558
    %560 = vmatprep.subr.mxu0 0.0
    %v561 = vand.u32 %v64, 4294901760
    %v562 = vsub.f32 %v64, %v561
    %v563 = vand.u32 %v562, 4294901760
    %564 = vmatpush1.msra.mxu0 %v563
    %565 = vmatprep.subr.mxu0 0.0
    %v566 = vand.u32 %v63, 4294901760
    %v567 = vsub.f32 %v63, %v566
    %v568 = vand.u32 %v567, 4294901760
    %569 = vmatpush1.msra.mxu0 %v568
    %570 = vmatprep.subr.mxu0 0.0
    %v571 = vand.u32 %v62, 4294901760
    %v572 = vsub.f32 %v62, %v571
    %v573 = vand.u32 %v572, 4294901760
    %574 = vmatpush1.msra.mxu0 %v573
    %575 = vmatprep.subr.mxu0 0.0
    %v576 = vand.u32 %v61, 4294901760
    %v577 = vsub.f32 %v61, %v576
    %v578 = vand.u32 %v577, 4294901760
    %579 = vmatpush1.msra.mxu0 %v578
    %580 = vmatprep.subr.mxu0 0.0
    %v581 = vand.u32 %v60, 4294901760
    %v582 = vsub.f32 %v60, %v581
    %v583 = vand.u32 %v582, 4294901760
    %584 = vmatpush1.msra.mxu0 %v583
    %585 = vmatprep.subr.mxu0 0.0
    %v586 = vand.u32 %v59, 4294901760
    %v587 = vsub.f32 %v59, %v586
    %v588 = vand.u32 %v587, 4294901760
    %589 = vmatpush1.msra.mxu0 %v588
    %590 = vmatprep.subr.mxu0 0.0
    %591 = vmatpush2.msra.mxu0 0.0
    %592 = vmatprep.subr.mxu0 0.0
    %593 = vmatpush2.msra.mxu0 0.0
    %594 = vmatprep.subr.mxu0 0.0
    %595 = vmatpush2.msra.mxu0 0.0
    %596 = vmatprep.subr.mxu0 0.0
    %597 = vmatpush2.msra.mxu0 0.0
    %598 = vmatprep.subr.mxu0 0.0
    %599 = vmatpush2.msra.mxu0 0.0
    %600 = vmatprep.subr.mxu0 0.0
    %601 = vmatpush2.msra.mxu0 0.0
    %602 = vmatprep.subr.mxu0 0.0
    %603 = vmatpush2.msra.mxu0 0.0
    %604 = vmatprep.subr.mxu0 0.0
    %605 = vmatpush2.msra.mxu0 0.0
    %606 = vmatprep.subr.mxu0 0.0
    %607 = vmatpush2.msra.mxu0 0.0
    %608 = vmatprep.subr.mxu0 0.0
    %609 = vmatpush2.msra.mxu0 0.0
    %610 = vmatprep.subr.mxu0 0.0
    %611 = vmatpush2.msra.mxu0 0.0
    %612 = vmatprep.subr.mxu0 0.0
    %613 = vmatpush2.msra.mxu0 0.0
    %614 = vmatprep.subr.mxu0 0.0
    %615 = vmatpush2.msra.mxu0 0.0
    %616 = vmatprep.subr.mxu0 0.0
    %617 = vmatpush2.msra.mxu0 0.0
    %618 = vmatprep.subr.mxu0 0.0
    %619 = vmatpush2.msra.mxu0 0.0
    %620 = vmatprep.subr.mxu0 0.0
    %621 = vmatpush2.msra.mxu0 0.0
    %622 = vmatprep.mubr.f32.mxu0 0.0
    %v623 = vand.u32 %v58, 4294901760
    %624 = vmatmul.mubr.f32.gmra.mxu0 %v623
    %v625 = vpop.f32.mrf.mxu0
    %v626 = vadd.f32 %v507, %v625
    %v627 = vpop.f32.mrf.mxu0
    %628 = vdwg.mxu0
    %629 = vmatprep.subr.mxu0 0.0
    %v630 = vand.u32 %v74, 4294901760
    %631 = vmatpush1.msra.mxu0 %v630
    %632 = vmatprep.subr.mxu0 0.0
    %v633 = vand.u32 %v73, 4294901760
    %634 = vmatpush1.msra.mxu0 %v633
    %635 = vmatprep.subr.mxu0 0.0
    %v636 = vand.u32 %v72, 4294901760
    %637 = vmatpush1.msra.mxu0 %v636
    %638 = vmatprep.subr.mxu0 0.0
    %v639 = vand.u32 %v71, 4294901760
    %640 = vmatpush1.msra.mxu0 %v639
    %641 = vmatprep.subr.mxu0 0.0
    %v642 = vand.u32 %v70, 4294901760
    %643 = vmatpush1.msra.mxu0 %v642
    %644 = vmatprep.subr.mxu0 0.0
    %v645 = vand.u32 %v69, 4294901760
    %646 = vmatpush1.msra.mxu0 %v645
    %647 = vmatprep.subr.mxu0 0.0
    %v648 = vand.u32 %v68, 4294901760
    %649 = vmatpush1.msra.mxu0 %v648
    %650 = vmatprep.subr.mxu0 0.0
    %v651 = vand.u32 %v67, 4294901760
    %652 = vmatpush1.msra.mxu0 %v651
    %653 = vmatprep.subr.mxu0 0.0
    %v654 = vand.u32 %v66, 4294901760
    %655 = vmatpush1.msra.mxu0 %v654
    %656 = vmatprep.subr.mxu0 0.0
    %v657 = vand.u32 %v65, 4294901760
    %658 = vmatpush1.msra.mxu0 %v657
    %659 = vmatprep.subr.mxu0 0.0
    %v660 = vand.u32 %v64, 4294901760
    %661 = vmatpush1.msra.mxu0 %v660
    %662 = vmatprep.subr.mxu0 0.0
    %v663 = vand.u32 %v63, 4294901760
    %664 = vmatpush1.msra.mxu0 %v663
    %665 = vmatprep.subr.mxu0 0.0
    %v666 = vand.u32 %v62, 4294901760
    %667 = vmatpush1.msra.mxu0 %v666
    %668 = vmatprep.subr.mxu0 0.0
    %v669 = vand.u32 %v61, 4294901760
    %670 = vmatpush1.msra.mxu0 %v669
    %671 = vmatprep.subr.mxu0 0.0
    %v672 = vand.u32 %v60, 4294901760
    %673 = vmatpush1.msra.mxu0 %v672
    %674 = vmatprep.subr.mxu0 0.0
    %v675 = vand.u32 %v59, 4294901760
    %676 = vmatpush1.msra.mxu0 %v675
    %677 = vmatprep.subr.mxu0 0.0
    %678 = vmatpush2.msra.mxu0 0.0
    %679 = vmatprep.subr.mxu0 0.0
    %680 = vmatpush2.msra.mxu0 0.0
    %681 = vmatprep.subr.mxu0 0.0
    %682 = vmatpush2.msra.mxu0 0.0
    %683 = vmatprep.subr.mxu0 0.0
    %684 = vmatpush2.msra.mxu0 0.0
    %685 = vmatprep.subr.mxu0 0.0
    %686 = vmatpush2.msra.mxu0 0.0
    %687 = vmatprep.subr.mxu0 0.0
    %688 = vmatpush2.msra.mxu0 0.0
    %689 = vmatprep.subr.mxu0 0.0
    %690 = vmatpush2.msra.mxu0 0.0
    %691 = vmatprep.subr.mxu0 0.0
    %692 = vmatpush2.msra.mxu0 0.0
    %693 = vmatprep.subr.mxu0 0.0
    %694 = vmatpush2.msra.mxu0 0.0
    %695 = vmatprep.subr.mxu0 0.0
    %696 = vmatpush2.msra.mxu0 0.0
    %697 = vmatprep.subr.mxu0 0.0
    %698 = vmatpush2.msra.mxu0 0.0
    %699 = vmatprep.subr.mxu0 0.0
    %700 = vmatpush2.msra.mxu0 0.0
    %701 = vmatprep.subr.mxu0 0.0
    %702 = vmatpush2.msra.mxu0 0.0
    %703 = vmatprep.subr.mxu0 0.0
    %704 = vmatpush2.msra.mxu0 0.0
    %705 = vmatprep.subr.mxu0 0.0
    %706 = vmatpush2.msra.mxu0 0.0
    %707 = vmatprep.subr.mxu0 0.0
    %708 = vmatpush2.msra.mxu0 0.0
    %709 = vmatprep.mubr.f32.mxu0 0.0
    %v710 = vand.u32 %v58, 4294901760
    %711 = vmatmul.mubr.f32.gmra.mxu0 %v710
    %v712 = vpop.f32.mrf.mxu0
    %v713 = vadd.f32 %v626, %v712
    %v714 = vpop.f32.mrf.mxu0
    %715 = vdwg.mxu0
    %s716 = sld [smem:[#allocation2]]
    %s717 = ssub.f32 %s716, 1.0
    %v718 = vstv %s717
    %v719 = vadd.f32 %v718, %v713
    %v720 = vmin.f32 %v719, 1.0
    %v721 = vmax.f32 %v720, 0.0
    %s722 = sld [smem:[#allocation2 + $0x4]]
    %v723 = vstv %s722
    %v724 = vmul.f32 %v723, %v721
    %v725 = vld [vmem:[%s4 + $0x1] sm:$0x1]
    %v726 = vld [vmem:[%s5 + $0x1] sm:$0x1]
    %v727 = vld [vmem:[%s2] sm:$0xff]
    %v728 = vlaneseq
    %v729 = vshrl.u32 %v728, 7
    %v730 = vsub.s32 0, %v729
    %v731 = vrot.slane %v725, %v730
    %v732 = vmul.f32 %v727, %v731
    %v733 = vlaneseq
    %v734 = vshrl.u32 %v733, 7
    %v735 = vsub.s32 0, %v734
    %v736 = vrot.slane %v726, %v735
    %v737 = vsub.f32 %v732, %v736
    %v738 = vxor.u32 %v737, 2147483648
    %v739 = vmul.f32 %v738, 1.442695
    %v740 = vpow.pop %v739
    %v741 = vadd.f32 %v740, 1.0
    %v742 = vrcp.pop %v741
    %v743 = vmul.f32 1.0, %v742
    %s744 = scalar_lea.vmem %s6, 128
    %v745 = vld [vmem:[%s744] sm:$0xff]
    %v746 = vld [vmem:[%s744 + $0x8] sm:$0xff]
    %v747 = vld [vmem:[%s744 + $0x10] sm:$0xff]
    %v748 = vld [vmem:[%s744 + $0x18] sm:$0xff]
    %v749 = vld [vmem:[%s744 + $0x20] sm:$0xff]
    %v750 = vld [vmem:[%s744 + $0x28] sm:$0xff]
    %v751 = vld [vmem:[%s744 + $0x30] sm:$0xff]
    %v752 = vld [vmem:[%s744 + $0x38] sm:$0xff]
    %v753 = vld [vmem:[%s744 + $0x40] sm:$0xff]
    %v754 = vld [vmem:[%s744 + $0x48] sm:$0xff]
    %v755 = vld [vmem:[%s744 + $0x50] sm:$0xff]
    %v756 = vld [vmem:[%s744 + $0x58] sm:$0xff]
    %v757 = vld [vmem:[%s744 + $0x60] sm:$0xff]
    %v758 = vld [vmem:[%s744 + $0x68] sm:$0xff]
    %v759 = vld [vmem:[%s744 + $0x70] sm:$0xff]
    %v760 = vld [vmem:[%s744 + $0x78] sm:$0xff]
    %761 = vmatprep.subr.mxu0 0.0
    %v762 = vand.u32 %v760, 4294901760
    %763 = vmatpush1.msra.mxu0 %v762
    %764 = vmatprep.subr.mxu0 0.0
    %v765 = vand.u32 %v759, 4294901760
    %766 = vmatpush1.msra.mxu0 %v765
    %767 = vmatprep.subr.mxu0 0.0
    %v768 = vand.u32 %v758, 4294901760
    %769 = vmatpush1.msra.mxu0 %v768
    %770 = vmatprep.subr.mxu0 0.0
    %v771 = vand.u32 %v757, 4294901760
    %772 = vmatpush1.msra.mxu0 %v771
    %773 = vmatprep.subr.mxu0 0.0
    %v774 = vand.u32 %v756, 4294901760
    %775 = vmatpush1.msra.mxu0 %v774
    %776 = vmatprep.subr.mxu0 0.0
    %v777 = vand.u32 %v755, 4294901760
    %778 = vmatpush1.msra.mxu0 %v777
    %779 = vmatprep.subr.mxu0 0.0
    %v780 = vand.u32 %v754, 4294901760
    %781 = vmatpush1.msra.mxu0 %v780
    %782 = vmatprep.subr.mxu0 0.0
    %v783 = vand.u32 %v753, 4294901760
    %784 = vmatpush1.msra.mxu0 %v783
    %785 = vmatprep.subr.mxu0 0.0
    %v786 = vand.u32 %v752, 4294901760
    %787 = vmatpush1.msra.mxu0 %v786
    %788 = vmatprep.subr.mxu0 0.0
    %v789 = vand.u32 %v751, 4294901760
    %790 = vmatpush1.msra.mxu0 %v789
    %791 = vmatprep.subr.mxu0 0.0
    %v792 = vand.u32 %v750, 4294901760
    %793 = vmatpush1.msra.mxu0 %v792
    %794 = vmatprep.subr.mxu0 0.0
    %v795 = vand.u32 %v749, 4294901760
    %796 = vmatpush1.msra.mxu0 %v795
    %797 = vmatprep.subr.mxu0 0.0
    %v798 = vand.u32 %v748, 4294901760
    %799 = vmatpush1.msra.mxu0 %v798
    %800 = vmatprep.subr.mxu0 0.0
    %v801 = vand.u32 %v747, 4294901760
    %802 = vmatpush1.msra.mxu0 %v801
    %803 = vmatprep.subr.mxu0 0.0
    %v804 = vand.u32 %v746, 4294901760
    %805 = vmatpush1.msra.mxu0 %v804
    %806 = vmatprep.subr.mxu0 0.0
    %v807 = vand.u32 %v745, 4294901760
    %808 = vmatpush1.msra.mxu0 %v807
    %809 = vmatprep.subr.mxu0 0.0
    %810 = vmatpush2.msra.mxu0 0.0
    %811 = vmatprep.subr.mxu0 0.0
    %812 = vmatpush2.msra.mxu0 0.0
    %813 = vmatprep.subr.mxu0 0.0
    %814 = vmatpush2.msra.mxu0 0.0
    %815 = vmatprep.subr.mxu0 0.0
    %816 = vmatpush2.msra.mxu0 0.0
    %817 = vmatprep.subr.mxu0 0.0
    %818 = vmatpush2.msra.mxu0 0.0
    %819 = vmatprep.subr.mxu0 0.0
    %820 = vmatpush2.msra.mxu0 0.0
    %821 = vmatprep.subr.mxu0 0.0
    %822 = vmatpush2.msra.mxu0 0.0
    %823 = vmatprep.subr.mxu0 0.0
    %824 = vmatpush2.msra.mxu0 0.0
    %825 = vmatprep.subr.mxu0 0.0
    %826 = vmatpush2.msra.mxu0 0.0
    %827 = vmatprep.subr.mxu0 0.0
    %828 = vmatpush2.msra.mxu0 0.0
    %829 = vmatprep.subr.mxu0 0.0
    %830 = vmatpush2.msra.mxu0 0.0
    %831 = vmatprep.subr.mxu0 0.0
    %832 = vmatpush2.msra.mxu0 0.0
    %833 = vmatprep.subr.mxu0 0.0
    %834 = vmatpush2.msra.mxu0 0.0
    %835 = vmatprep.subr.mxu0 0.0
    %836 = vmatpush2.msra.mxu0 0.0
    %837 = vmatprep.subr.mxu0 0.0
    %838 = vmatpush2.msra.mxu0 0.0
    %839 = vmatprep.subr.mxu0 0.0
    %840 = vmatpush2.msra.mxu0 0.0
    %841 = vmatprep.mubr.f32.mxu0 0.0
    %v842 = vand.u32 %v743, 4294901760
    %v843 = vsub.f32 %v743, %v842
    %v844 = vand.u32 %v843, 4294901760
    %v845 = vsub.f32 %v843, %v844
    %v846 = vand.u32 %v845, 4294901760
    %847 = vmatmul.mubr.f32.gmra.mxu0 %v846
    %v848 = vpop.f32.mrf.mxu0
    %v849 = vadd.f32 0.0, %v848
    %v850 = vpop.f32.mrf.mxu0
    %851 = vdwg.mxu0
    %852 = vmatprep.subr.mxu0 0.0
    %v853 = vand.u32 %v760, 4294901760
    %v854 = vsub.f32 %v760, %v853
    %v855 = vand.u32 %v854, 4294901760
    %v856 = vsub.f32 %v854, %v855
    %v857 = vand.u32 %v856, 4294901760
    %858 = vmatpush1.msra.mxu0 %v857
    %859 = vmatprep.subr.mxu0 0.0
    %v860 = vand.u32 %v759, 4294901760
    %v861 = vsub.f32 %v759, %v860
    %v862 = vand.u32 %v861, 4294901760
    %v863 = vsub.f32 %v861, %v862
    %v864 = vand.u32 %v863, 4294901760
    %865 = vmatpush1.msra.mxu0 %v864
    %866 = vmatprep.subr.mxu0 0.0
    %v867 = vand.u32 %v758, 4294901760
    %v868 = vsub.f32 %v758, %v867
    %v869 = vand.u32 %v868, 4294901760
    %v870 = vsub.f32 %v868, %v869
    %v871 = vand.u32 %v870, 4294901760
    %872 = vmatpush1.msra.mxu0 %v871
    %873 = vmatprep.subr.mxu0 0.0
    %v874 = vand.u32 %v757, 4294901760
    %v875 = vsub.f32 %v757, %v874
    %v876 = vand.u32 %v875, 4294901760
    %v877 = vsub.f32 %v875, %v876
    %v878 = vand.u32 %v877, 4294901760
    %879 = vmatpush1.msra.mxu0 %v878
    %880 = vmatprep.subr.mxu0 0.0
    %v881 = vand.u32 %v756, 4294901760
    %v882 = vsub.f32 %v756, %v881
    %v883 = vand.u32 %v882, 4294901760
    %v884 = vsub.f32 %v882, %v883
    %v885 = vand.u32 %v884, 4294901760
    %886 = vmatpush1.msra.mxu0 %v885
    %887 = vmatprep.subr.mxu0 0.0
    %v888 = vand.u32 %v755, 4294901760
    %v889 = vsub.f32 %v755, %v888
    %v890 = vand.u32 %v889, 4294901760
    %v891 = vsub.f32 %v889, %v890
    %v892 = vand.u32 %v891, 4294901760
    %893 = vmatpush1.msra.mxu0 %v892
    %894 = vmatprep.subr.mxu0 0.0
    %v895 = vand.u32 %v754, 4294901760
    %v896 = vsub.f32 %v754, %v895
    %v897 = vand.u32 %v896, 4294901760
    %v898 = vsub.f32 %v896, %v897
    %v899 = vand.u32 %v898, 4294901760
    %900 = vmatpush1.msra.mxu0 %v899
    %901 = vmatprep.subr.mxu0 0.0
    %v902 = vand.u32 %v753, 4294901760
    %v903 = vsub.f32 %v753, %v902
    %v904 = vand.u32 %v903, 4294901760
    %v905 = vsub.f32 %v903, %v904
    %v906 = vand.u32 %v905, 4294901760
    %907 = vmatpush1.msra.mxu0 %v906
    %908 = vmatprep.subr.mxu0 0.0
    %v909 = vand.u32 %v752, 4294901760
    %v910 = vsub.f32 %v752, %v909
    %v911 = vand.u32 %v910, 4294901760
    %v912 = vsub.f32 %v910, %v911
    %v913 = vand.u32 %v912, 4294901760
    %914 = vmatpush1.msra.mxu0 %v913
    %915 = vmatprep.subr.mxu0 0.0
    %v916 = vand.u32 %v751, 4294901760
    %v917 = vsub.f32 %v751, %v916
    %v918 = vand.u32 %v917, 4294901760
    %v919 = vsub.f32 %v917, %v918
    %v920 = vand.u32 %v919, 4294901760
    %921 = vmatpush1.msra.mxu0 %v920
    %922 = vmatprep.subr.mxu0 0.0
    %v923 = vand.u32 %v750, 4294901760
    %v924 = vsub.f32 %v750, %v923
    %v925 = vand.u32 %v924, 4294901760
    %v926 = vsub.f32 %v924, %v925
    %v927 = vand.u32 %v926, 4294901760
    %928 = vmatpush1.msra.mxu0 %v927
    %929 = vmatprep.subr.mxu0 0.0
    %v930 = vand.u32 %v749, 4294901760
    %v931 = vsub.f32 %v749, %v930
    %v932 = vand.u32 %v931, 4294901760
    %v933 = vsub.f32 %v931, %v932
    %v934 = vand.u32 %v933, 4294901760
    %935 = vmatpush1.msra.mxu0 %v934
    %936 = vmatprep.subr.mxu0 0.0
    %v937 = vand.u32 %v748, 4294901760
    %v938 = vsub.f32 %v748, %v937
    %v939 = vand.u32 %v938, 4294901760
    %v940 = vsub.f32 %v938, %v939
    %v941 = vand.u32 %v940, 4294901760
    %942 = vmatpush1.msra.mxu0 %v941
    %943 = vmatprep.subr.mxu0 0.0
    %v944 = vand.u32 %v747, 4294901760
    %v945 = vsub.f32 %v747, %v944
    %v946 = vand.u32 %v945, 4294901760
    %v947 = vsub.f32 %v945, %v946
    %v948 = vand.u32 %v947, 4294901760
    %949 = vmatpush1.msra.mxu0 %v948
    %950 = vmatprep.subr.mxu0 0.0
    %v951 = vand.u32 %v746, 4294901760
    %v952 = vsub.f32 %v746, %v951
    %v953 = vand.u32 %v952, 4294901760
    %v954 = vsub.f32 %v952, %v953
    %v955 = vand.u32 %v954, 4294901760
    %956 = vmatpush1.msra.mxu0 %v955
    %957 = vmatprep.subr.mxu0 0.0
    %v958 = vand.u32 %v745, 4294901760
    %v959 = vsub.f32 %v745, %v958
    %v960 = vand.u32 %v959, 4294901760
    %v961 = vsub.f32 %v959, %v960
    %v962 = vand.u32 %v961, 4294901760
    %963 = vmatpush1.msra.mxu0 %v962
    %964 = vmatprep.subr.mxu0 0.0
    %965 = vmatpush2.msra.mxu0 0.0
    %966 = vmatprep.subr.mxu0 0.0
    %967 = vmatpush2.msra.mxu0 0.0
    %968 = vmatprep.subr.mxu0 0.0
    %969 = vmatpush2.msra.mxu0 0.0
    %970 = vmatprep.subr.mxu0 0.0
    %971 = vmatpush2.msra.mxu0 0.0
    %972 = vmatprep.subr.mxu0 0.0
    %973 = vmatpush2.msra.mxu0 0.0
    %974 = vmatprep.subr.mxu0 0.0
    %975 = vmatpush2.msra.mxu0 0.0
    %976 = vmatprep.subr.mxu0 0.0
    %977 = vmatpush2.msra.mxu0 0.0
    %978 = vmatprep.subr.mxu0 0.0
    %979 = vmatpush2.msra.mxu0 0.0
    %980 = vmatprep.subr.mxu0 0.0
    %981 = vmatpush2.msra.mxu0 0.0
    %982 = vmatprep.subr.mxu0 0.0
    %983 = vmatpush2.msra.mxu0 0.0
    %984 = vmatprep.subr.mxu0 0.0
    %985 = vmatpush2.msra.mxu0 0.0
    %986 = vmatprep.subr.mxu0 0.0
    %987 = vmatpush2.msra.mxu0 0.0
    %988 = vmatprep.subr.mxu0 0.0
    %989 = vmatpush2.msra.mxu0 0.0
    %990 = vmatprep.subr.mxu0 0.0
    %991 = vmatpush2.msra.mxu0 0.0
    %992 = vmatprep.subr.mxu0 0.0
    %993 = vmatpush2.msra.mxu0 0.0
    %994 = vmatprep.subr.mxu0 0.0
    %995 = vmatpush2.msra.mxu0 0.0
    %996 = vmatprep.mubr.f32.mxu0 0.0
    %v997 = vand.u32 %v743, 4294901760
    %998 = vmatmul.mubr.f32.gmra.mxu0 %v997
    %v999 = vpop.f32.mrf.mxu0
    %v1000 = vadd.f32 %v849, %v999
    %v1001 = vpop.f32.mrf.mxu0
    %1002 = vdwg.mxu0
    %1003 = vmatprep.subr.mxu0 0.0
    %v1004 = vand.u32 %v760, 4294901760
    %v1005 = vsub.f32 %v760, %v1004
    %1006 = vmatpush1.msra.mxu0 %v1005
    %1007 = vmatprep.subr.mxu0 0.0
    %v1008 = vand.u32 %v759, 4294901760
    %v1009 = vsub.f32 %v759, %v1008
    %1010 = vmatpush1.msra.mxu0 %v1009
    %1011 = vmatprep.subr.mxu0 0.0
    %v1012 = vand.u32 %v758, 4294901760
    %v1013 = vsub.f32 %v758, %v1012
    %1014 = vmatpush1.msra.mxu0 %v1013
    %1015 = vmatprep.subr.mxu0 0.0
    %v1016 = vand.u32 %v757, 4294901760
    %v1017 = vsub.f32 %v757, %v1016
    %1018 = vmatpush1.msra.mxu0 %v1017
    %1019 = vmatprep.subr.mxu0 0.0
    %v1020 = vand.u32 %v756, 4294901760
    %v1021 = vsub.f32 %v756, %v1020
    %1022 = vmatpush1.msra.mxu0 %v1021
    %1023 = vmatprep.subr.mxu0 0.0
    %v1024 = vand.u32 %v755, 4294901760
    %v1025 = vsub.f32 %v755, %v1024
    %1026 = vmatpush1.msra.mxu0 %v1025
    %1027 = vmatprep.subr.mxu0 0.0
    %v1028 = vand.u32 %v754, 4294901760
    %v1029 = vsub.f32 %v754, %v1028
    %1030 = vmatpush1.msra.mxu0 %v1029
    %1031 = vmatprep.subr.mxu0 0.0
    %v1032 = vand.u32 %v753, 4294901760
    %v1033 = vsub.f32 %v753, %v1032
    %1034 = vmatpush1.msra.mxu0 %v1033
    %1035 = vmatprep.subr.mxu0 0.0
    %v1036 = vand.u32 %v752, 4294901760
    %v1037 = vsub.f32 %v752, %v1036
    %1038 = vmatpush1.msra.mxu0 %v1037
    %1039 = vmatprep.subr.mxu0 0.0
    %v1040 = vand.u32 %v751, 4294901760
    %v1041 = vsub.f32 %v751, %v1040
    %1042 = vmatpush1.msra.mxu0 %v1041
    %1043 = vmatprep.subr.mxu0 0.0
    %v1044 = vand.u32 %v750, 4294901760
    %v1045 = vsub.f32 %v750, %v1044
    %1046 = vmatpush1.msra.mxu0 %v1045
    %1047 = vmatprep.subr.mxu0 0.0
    %v1048 = vand.u32 %v749, 4294901760
    %v1049 = vsub.f32 %v749, %v1048
    %1050 = vmatpush1.msra.mxu0 %v1049
    %1051 = vmatprep.subr.mxu0 0.0
    %v1052 = vand.u32 %v748, 4294901760
    %v1053 = vsub.f32 %v748, %v1052
    %1054 = vmatpush1.msra.mxu0 %v1053
    %1055 = vmatprep.subr.mxu0 0.0
    %v1056 = vand.u32 %v747, 4294901760
    %v1057 = vsub.f32 %v747, %v1056
    %1058 = vmatpush1.msra.mxu0 %v1057
    %1059 = vmatprep.subr.mxu0 0.0
    %v1060 = vand.u32 %v746, 4294901760
    %v1061 = vsub.f32 %v746, %v1060
    %1062 = vmatpush1.msra.mxu0 %v1061
    %1063 = vmatprep.subr.mxu0 0.0
    %v1064 = vand.u32 %v745, 4294901760
    %v1065 = vsub.f32 %v745, %v1064
    %1066 = vmatpush1.msra.mxu0 %v1065
    %1067 = vmatprep.subr.mxu0 0.0
    %1068 = vmatpush2.msra.mxu0 0.0
    %1069 = vmatprep.subr.mxu0 0.0
    %1070 = vmatpush2.msra.mxu0 0.0
    %1071 = vmatprep.subr.mxu0 0.0
    %1072 = vmatpush2.msra.mxu0 0.0
    %1073 = vmatprep.subr.mxu0 0.0
    %1074 = vmatpush2.msra.mxu0 0.0
    %1075 = vmatprep.subr.mxu0 0.0
    %1076 = vmatpush2.msra.mxu0 0.0
    %1077 = vmatprep.subr.mxu0 0.0
    %1078 = vmatpush2.msra.mxu0 0.0
    %1079 = vmatprep.subr.mxu0 0.0
    %1080 = vmatpush2.msra.mxu0 0.0
    %1081 = vmatprep.subr.mxu0 0.0
    %1082 = vmatpush2.msra.mxu0 0.0
    %1083 = vmatprep.subr.mxu0 0.0
    %1084 = vmatpush2.msra.mxu0 0.0
    %1085 = vmatprep.subr.mxu0 0.0
    %1086 = vmatpush2.msra.mxu0 0.0
    %1087 = vmatprep.subr.mxu0 0.0
    %1088 = vmatpush2.msra.mxu0 0.0
    %1089 = vmatprep.subr.mxu0 0.0
    %1090 = vmatpush2.msra.mxu0 0.0
    %1091 = vmatprep.subr.mxu0 0.0
    %1092 = vmatpush2.msra.mxu0 0.0
    %1093 = vmatprep.subr.mxu0 0.0
    %1094 = vmatpush2.msra.mxu0 0.0
    %1095 = vmatprep.subr.mxu0 0.0
    %1096 = vmatpush2.msra.mxu0 0.0
    %1097 = vmatprep.subr.mxu0 0.0
    %1098 = vmatpush2.msra.mxu0 0.0
    %1099 = vmatprep.mubr.f32.mxu0 0.0
    %v1100 = vand.u32 %v743, 4294901760
    %v1101 = vsub.f32 %v743, %v1100
    %1102 = vmatmul.mubr.f32.gmra.mxu0 %v1101
    %v1103 = vpop.f32.mrf.mxu0
    %v1104 = vadd.f32 %v1000, %v1103
    %v1105 = vpop.f32.mrf.mxu0
    %1106 = vdwg.mxu0
    %1107 = vmatprep.subr.mxu0 0.0
    %v1108 = vand.u32 %v760, 4294901760
    %1109 = vmatpush1.msra.mxu0 %v1108
    %1110 = vmatprep.subr.mxu0 0.0
    %v1111 = vand.u32 %v759, 4294901760
    %1112 = vmatpush1.msra.mxu0 %v1111
    %1113 = vmatprep.subr.mxu0 0.0
    %v1114 = vand.u32 %v758, 4294901760
    %1115 = vmatpush1.msra.mxu0 %v1114
    %1116 = vmatprep.subr.mxu0 0.0
    %v1117 = vand.u32 %v757, 4294901760
    %1118 = vmatpush1.msra.mxu0 %v1117
    %1119 = vmatprep.subr.mxu0 0.0
    %v1120 = vand.u32 %v756, 4294901760
    %1121 = vmatpush1.msra.mxu0 %v1120
    %1122 = vmatprep.subr.mxu0 0.0
    %v1123 = vand.u32 %v755, 4294901760
    %1124 = vmatpush1.msra.mxu0 %v1123
    %1125 = vmatprep.subr.mxu0 0.0
    %v1126 = vand.u32 %v754, 4294901760
    %1127 = vmatpush1.msra.mxu0 %v1126
    %1128 = vmatprep.subr.mxu0 0.0
    %v1129 = vand.u32 %v753, 4294901760
    %1130 = vmatpush1.msra.mxu0 %v1129
    %1131 = vmatprep.subr.mxu0 0.0
    %v1132 = vand.u32 %v752, 4294901760
    %1133 = vmatpush1.msra.mxu0 %v1132
    %1134 = vmatprep.subr.mxu0 0.0
    %v1135 = vand.u32 %v751, 4294901760
    %1136 = vmatpush1.msra.mxu0 %v1135
    %1137 = vmatprep.subr.mxu0 0.0
    %v1138 = vand.u32 %v750, 4294901760
    %1139 = vmatpush1.msra.mxu0 %v1138
    %1140 = vmatprep.subr.mxu0 0.0
    %v1141 = vand.u32 %v749, 4294901760
    %1142 = vmatpush1.msra.mxu0 %v1141
    %1143 = vmatprep.subr.mxu0 0.0
    %v1144 = vand.u32 %v748, 4294901760
    %1145 = vmatpush1.msra.mxu0 %v1144
    %1146 = vmatprep.subr.mxu0 0.0
    %v1147 = vand.u32 %v747, 4294901760
    %1148 = vmatpush1.msra.mxu0 %v1147
    %1149 = vmatprep.subr.mxu0 0.0
    %v1150 = vand.u32 %v746, 4294901760
    %1151 = vmatpush1.msra.mxu0 %v1150
    %1152 = vmatprep.subr.mxu0 0.0
    %v1153 = vand.u32 %v745, 4294901760
    %1154 = vmatpush1.msra.mxu0 %v1153
    %1155 = vmatprep.subr.mxu0 0.0
    %1156 = vmatpush2.msra.mxu0 0.0
    %1157 = vmatprep.subr.mxu0 0.0
    %1158 = vmatpush2.msra.mxu0 0.0
    %1159 = vmatprep.subr.mxu0 0.0
    %1160 = vmatpush2.msra.mxu0 0.0
    %1161 = vmatprep.subr.mxu0 0.0
    %1162 = vmatpush2.msra.mxu0 0.0
    %1163 = vmatprep.subr.mxu0 0.0
    %1164 = vmatpush2.msra.mxu0 0.0
    %1165 = vmatprep.subr.mxu0 0.0
    %1166 = vmatpush2.msra.mxu0 0.0
    %1167 = vmatprep.subr.mxu0 0.0
    %1168 = vmatpush2.msra.mxu0 0.0
    %1169 = vmatprep.subr.mxu0 0.0
    %1170 = vmatpush2.msra.mxu0 0.0
    %1171 = vmatprep.subr.mxu0 0.0
    %1172 = vmatpush2.msra.mxu0 0.0
    %1173 = vmatprep.subr.mxu0 0.0
    %1174 = vmatpush2.msra.mxu0 0.0
    %1175 = vmatprep.subr.mxu0 0.0
    %1176 = vmatpush2.msra.mxu0 0.0
    %1177 = vmatprep.subr.mxu0 0.0
    %1178 = vmatpush2.msra.mxu0 0.0
    %1179 = vmatprep.subr.mxu0 0.0
    %1180 = vmatpush2.msra.mxu0 0.0
    %1181 = vmatprep.subr.mxu0 0.0
    %1182 = vmatpush2.msra.mxu0 0.0
    %1183 = vmatprep.subr.mxu0 0.0
    %1184 = vmatpush2.msra.mxu0 0.0
    %1185 = vmatprep.subr.mxu0 0.0
    %1186 = vmatpush2.msra.mxu0 0.0
    %1187 = vmatprep.mubr.f32.mxu0 0.0
    %v1188 = vand.u32 %v743, 4294901760
    %v1189 = vsub.f32 %v743, %v1188
    %v1190 = vand.u32 %v1189, 4294901760
    %1191 = vmatmul.mubr.f32.gmra.mxu0 %v1190
    %v1192 = vpop.f32.mrf.mxu0
    %v1193 = vadd.f32 %v1104, %v1192
    %v1194 = vpop.f32.mrf.mxu0
    %1195 = vdwg.mxu0
    %1196 = vmatprep.subr.mxu0 0.0
    %v1197 = vand.u32 %v760, 4294901760
    %v1198 = vsub.f32 %v760, %v1197
    %v1199 = vand.u32 %v1198, 4294901760
    %1200 = vmatpush1.msra.mxu0 %v1199
    %1201 = vmatprep.subr.mxu0 0.0
    %v1202 = vand.u32 %v759, 4294901760
    %v1203 = vsub.f32 %v759, %v1202
    %v1204 = vand.u32 %v1203, 4294901760
    %1205 = vmatpush1.msra.mxu0 %v1204
    %1206 = vmatprep.subr.mxu0 0.0
    %v1207 = vand.u32 %v758, 4294901760
    %v1208 = vsub.f32 %v758, %v1207
    %v1209 = vand.u32 %v1208, 4294901760
    %1210 = vmatpush1.msra.mxu0 %v1209
    %1211 = vmatprep.subr.mxu0 0.0
    %v1212 = vand.u32 %v757, 4294901760
    %v1213 = vsub.f32 %v757, %v1212
    %v1214 = vand.u32 %v1213, 4294901760
    %1215 = vmatpush1.msra.mxu0 %v1214
    %1216 = vmatprep.subr.mxu0 0.0
    %v1217 = vand.u32 %v756, 4294901760
    %v1218 = vsub.f32 %v756, %v1217
    %v1219 = vand.u32 %v1218, 4294901760
    %1220 = vmatpush1.msra.mxu0 %v1219
    %1221 = vmatprep.subr.mxu0 0.0
    %v1222 = vand.u32 %v755, 4294901760
    %v1223 = vsub.f32 %v755, %v1222
    %v1224 = vand.u32 %v1223, 4294901760
    %1225 = vmatpush1.msra.mxu0 %v1224
    %1226 = vmatprep.subr.mxu0 0.0
    %v1227 = vand.u32 %v754, 4294901760
    %v1228 = vsub.f32 %v754, %v1227
    %v1229 = vand.u32 %v1228, 4294901760
    %1230 = vmatpush1.msra.mxu0 %v1229
    %1231 = vmatprep.subr.mxu0 0.0
    %v1232 = vand.u32 %v753, 4294901760
    %v1233 = vsub.f32 %v753, %v1232
    %v1234 = vand.u32 %v1233, 4294901760
    %1235 = vmatpush1.msra.mxu0 %v1234
    %1236 = vmatprep.subr.mxu0 0.0
    %v1237 = vand.u32 %v752, 4294901760
    %v1238 = vsub.f32 %v752, %v1237
    %v1239 = vand.u32 %v1238, 4294901760
    %1240 = vmatpush1.msra.mxu0 %v1239
    %1241 = vmatprep.subr.mxu0 0.0
    %v1242 = vand.u32 %v751, 4294901760
    %v1243 = vsub.f32 %v751, %v1242
    %v1244 = vand.u32 %v1243, 4294901760
    %1245 = vmatpush1.msra.mxu0 %v1244
    %1246 = vmatprep.subr.mxu0 0.0
    %v1247 = vand.u32 %v750, 4294901760
    %v1248 = vsub.f32 %v750, %v1247
    %v1249 = vand.u32 %v1248, 4294901760
    %1250 = vmatpush1.msra.mxu0 %v1249
    %1251 = vmatprep.subr.mxu0 0.0
    %v1252 = vand.u32 %v749, 4294901760
    %v1253 = vsub.f32 %v749, %v1252
    %v1254 = vand.u32 %v1253, 4294901760
    %1255 = vmatpush1.msra.mxu0 %v1254
    %1256 = vmatprep.subr.mxu0 0.0
    %v1257 = vand.u32 %v748, 4294901760
    %v1258 = vsub.f32 %v748, %v1257
    %v1259 = vand.u32 %v1258, 4294901760
    %1260 = vmatpush1.msra.mxu0 %v1259
    %1261 = vmatprep.subr.mxu0 0.0
    %v1262 = vand.u32 %v747, 4294901760
    %v1263 = vsub.f32 %v747, %v1262
    %v1264 = vand.u32 %v1263, 4294901760
    %1265 = vmatpush1.msra.mxu0 %v1264
    %1266 = vmatprep.subr.mxu0 0.0
    %v1267 = vand.u32 %v746, 4294901760
    %v1268 = vsub.f32 %v746, %v1267
    %v1269 = vand.u32 %v1268, 4294901760
    %1270 = vmatpush1.msra.mxu0 %v1269
    %1271 = vmatprep.subr.mxu0 0.0
    %v1272 = vand.u32 %v745, 4294901760
    %v1273 = vsub.f32 %v745, %v1272
    %v1274 = vand.u32 %v1273, 4294901760
    %1275 = vmatpush1.msra.mxu0 %v1274
    %1276 = vmatprep.subr.mxu0 0.0
    %1277 = vmatpush2.msra.mxu0 0.0
    %1278 = vmatprep.subr.mxu0 0.0
    %1279 = vmatpush2.msra.mxu0 0.0
    %1280 = vmatprep.subr.mxu0 0.0
    %1281 = vmatpush2.msra.mxu0 0.0
    %1282 = vmatprep.subr.mxu0 0.0
    %1283 = vmatpush2.msra.mxu0 0.0
    %1284 = vmatprep.subr.mxu0 0.0
    %1285 = vmatpush2.msra.mxu0 0.0
    %1286 = vmatprep.subr.mxu0 0.0
    %1287 = vmatpush2.msra.mxu0 0.0
    %1288 = vmatprep.subr.mxu0 0.0
    %1289 = vmatpush2.msra.mxu0 0.0
    %1290 = vmatprep.subr.mxu0 0.0
    %1291 = vmatpush2.msra.mxu0 0.0
    %1292 = vmatprep.subr.mxu0 0.0
    %1293 = vmatpush2.msra.mxu0 0.0
    %1294 = vmatprep.subr.mxu0 0.0
    %1295 = vmatpush2.msra.mxu0 0.0
    %1296 = vmatprep.subr.mxu0 0.0
    %1297 = vmatpush2.msra.mxu0 0.0
    %1298 = vmatprep.subr.mxu0 0.0
    %1299 = vmatpush2.msra.mxu0 0.0
    %1300 = vmatprep.subr.mxu0 0.0
    %1301 = vmatpush2.msra.mxu0 0.0
    %1302 = vmatprep.subr.mxu0 0.0
    %1303 = vmatpush2.msra.mxu0 0.0
    %1304 = vmatprep.subr.mxu0 0.0
    %1305 = vmatpush2.msra.mxu0 0.0
    %1306 = vmatprep.subr.mxu0 0.0
    %1307 = vmatpush2.msra.mxu0 0.0
    %1308 = vmatprep.mubr.f32.mxu0 0.0
    %v1309 = vand.u32 %v743, 4294901760
    %1310 = vmatmul.mubr.f32.gmra.mxu0 %v1309
    %v1311 = vpop.f32.mrf.mxu0
    %v1312 = vadd.f32 %v1193, %v1311
    %v1313 = vpop.f32.mrf.mxu0
    %1314 = vdwg.mxu0
    %1315 = vmatprep.subr.mxu0 0.0
    %v1316 = vand.u32 %v760, 4294901760
    %1317 = vmatpush1.msra.mxu0 %v1316
    %1318 = vmatprep.subr.mxu0 0.0
    %v1319 = vand.u32 %v759, 4294901760
    %1320 = vmatpush1.msra.mxu0 %v1319
    %1321 = vmatprep.subr.mxu0 0.0
    %v1322 = vand.u32 %v758, 4294901760
    %1323 = vmatpush1.msra.mxu0 %v1322
    %1324 = vmatprep.subr.mxu0 0.0
    %v1325 = vand.u32 %v757, 4294901760
    %1326 = vmatpush1.msra.mxu0 %v1325
    %1327 = vmatprep.subr.mxu0 0.0
    %v1328 = vand.u32 %v756, 4294901760
    %1329 = vmatpush1.msra.mxu0 %v1328
    %1330 = vmatprep.subr.mxu0 0.0
    %v1331 = vand.u32 %v755, 4294901760
    %1332 = vmatpush1.msra.mxu0 %v1331
    %1333 = vmatprep.subr.mxu0 0.0
    %v1334 = vand.u32 %v754, 4294901760
    %1335 = vmatpush1.msra.mxu0 %v1334
    %1336 = vmatprep.subr.mxu0 0.0
    %v1337 = vand.u32 %v753, 4294901760
    %1338 = vmatpush1.msra.mxu0 %v1337
    %1339 = vmatprep.subr.mxu0 0.0
    %v1340 = vand.u32 %v752, 4294901760
    %1341 = vmatpush1.msra.mxu0 %v1340
    %1342 = vmatprep.subr.mxu0 0.0
    %v1343 = vand.u32 %v751, 4294901760
    %1344 = vmatpush1.msra.mxu0 %v1343
    %1345 = vmatprep.subr.mxu0 0.0
    %v1346 = vand.u32 %v750, 4294901760
    %1347 = vmatpush1.msra.mxu0 %v1346
    %1348 = vmatprep.subr.mxu0 0.0
    %v1349 = vand.u32 %v749, 4294901760
    %1350 = vmatpush1.msra.mxu0 %v1349
    %1351 = vmatprep.subr.mxu0 0.0
    %v1352 = vand.u32 %v748, 4294901760
    %1353 = vmatpush1.msra.mxu0 %v1352
    %1354 = vmatprep.subr.mxu0 0.0
    %v1355 = vand.u32 %v747, 4294901760
    %1356 = vmatpush1.msra.mxu0 %v1355
    %1357 = vmatprep.subr.mxu0 0.0
    %v1358 = vand.u32 %v746, 4294901760
    %1359 = vmatpush1.msra.mxu0 %v1358
    %1360 = vmatprep.subr.mxu0 0.0
    %v1361 = vand.u32 %v745, 4294901760
    %1362 = vmatpush1.msra.mxu0 %v1361
    %1363 = vmatprep.subr.mxu0 0.0
    %1364 = vmatpush2.msra.mxu0 0.0
    %1365 = vmatprep.subr.mxu0 0.0
    %1366 = vmatpush2.msra.mxu0 0.0
    %1367 = vmatprep.subr.mxu0 0.0
    %1368 = vmatpush2.msra.mxu0 0.0
    %1369 = vmatprep.subr.mxu0 0.0
    %1370 = vmatpush2.msra.mxu0 0.0
    %1371 = vmatprep.subr.mxu0 0.0
    %1372 = vmatpush2.msra.mxu0 0.0
    %1373 = vmatprep.subr.mxu0 0.0
    %1374 = vmatpush2.msra.mxu0 0.0
    %1375 = vmatprep.subr.mxu0 0.0
    %1376 = vmatpush2.msra.mxu0 0.0
    %1377 = vmatprep.subr.mxu0 0.0
    %1378 = vmatpush2.msra.mxu0 0.0
    %1379 = vmatprep.subr.mxu0 0.0
    %1380 = vmatpush2.msra.mxu0 0.0
    %1381 = vmatprep.subr.mxu0 0.0
    %1382 = vmatpush2.msra.mxu0 0.0
    %1383 = vmatprep.subr.mxu0 0.0
    %1384 = vmatpush2.msra.mxu0 0.0
    %1385 = vmatprep.subr.mxu0 0.0
    %1386 = vmatpush2.msra.mxu0 0.0
    %1387 = vmatprep.subr.mxu0 0.0
    %1388 = vmatpush2.msra.mxu0 0.0
    %1389 = vmatprep.subr.mxu0 0.0
    %1390 = vmatpush2.msra.mxu0 0.0
    %1391 = vmatprep.subr.mxu0 0.0
    %1392 = vmatpush2.msra.mxu0 0.0
    %1393 = vmatprep.subr.mxu0 0.0
    %1394 = vmatpush2.msra.mxu0 0.0
    %1395 = vmatprep.mubr.f32.mxu0 0.0
    %v1396 = vand.u32 %v743, 4294901760
    %1397 = vmatmul.mubr.f32.gmra.mxu0 %v1396
    %v1398 = vpop.f32.mrf.mxu0
    %v1399 = vadd.f32 %v1312, %v1398
    %v1400 = vpop.f32.mrf.mxu0
    %1401 = vdwg.mxu0
    %s1402 = sld [smem:[#allocation2 + $0x1]]
    %s1403 = ssub.f32 %s1402, 1.0
    %v1404 = vstv %s1403
    %v1405 = vadd.f32 %v1404, %v1399
    %v1406 = vmin.f32 %v1405, 1.0
    %v1407 = vmax.f32 %v1406, 0.0
    %s1408 = sld [smem:[#allocation2 + $0x5]]
    %v1409 = vstv %s1408
    %v1410 = vmul.f32 %v1409, %v1407
    %v1411 = vadd.f32 %v724, %v1410
    %v1412 = vld [vmem:[%s4 + $0x2] sm:$0x1]
    %v1413 = vld [vmem:[%s5 + $0x2] sm:$0x1]
    %v1414 = vld [vmem:[%s3] sm:$0xff]
    %v1415 = vlaneseq
    %v1416 = vshrl.u32 %v1415, 7
    %v1417 = vsub.s32 0, %v1416
    %v1418 = vrot.slane %v1412, %v1417
    %v1419 = vmul.f32 %v1414, %v1418
    %v1420 = vlaneseq
    %v1421 = vshrl.u32 %v1420, 7
    %v1422 = vsub.s32 0, %v1421
    %v1423 = vrot.slane %v1413, %v1422
    %v1424 = vsub.f32 %v1419, %v1423
    %v1425 = vxor.u32 %v1424, 2147483648
    %v1426 = vmul.f32 %v1425, 1.442695
    %v1427 = vpow.pop %v1426
    %v1428 = vadd.f32 %v1427, 1.0
    %v1429 = vrcp.pop %v1428
    %v1430 = vmul.f32 1.0, %v1429
    %s1431 = scalar_lea.vmem %s6, 256
    %v1432 = vld [vmem:[%s1431] sm:$0xff]
    %v1433 = vld [vmem:[%s1431 + $0x8] sm:$0xff]
    %v1434 = vld [vmem:[%s1431 + $0x10] sm:$0xff]
    %v1435 = vld [vmem:[%s1431 + $0x18] sm:$0xff]
    %v1436 = vld [vmem:[%s1431 + $0x20] sm:$0xff]
    %v1437 = vld [vmem:[%s1431 + $0x28] sm:$0xff]
    %v1438 = vld [vmem:[%s1431 + $0x30] sm:$0xff]
    %v1439 = vld [vmem:[%s1431 + $0x38] sm:$0xff]
    %v1440 = vld [vmem:[%s1431 + $0x40] sm:$0xff]
    %v1441 = vld [vmem:[%s1431 + $0x48] sm:$0xff]
    %v1442 = vld [vmem:[%s1431 + $0x50] sm:$0xff]
    %v1443 = vld [vmem:[%s1431 + $0x58] sm:$0xff]
    %v1444 = vld [vmem:[%s1431 + $0x60] sm:$0xff]
    %v1445 = vld [vmem:[%s1431 + $0x68] sm:$0xff]
    %v1446 = vld [vmem:[%s1431 + $0x70] sm:$0xff]
    %v1447 = vld [vmem:[%s1431 + $0x78] sm:$0xff]
    %1448 = vmatprep.subr.mxu0 0.0
    %v1449 = vand.u32 %v1447, 4294901760
    %1450 = vmatpush1.msra.mxu0 %v1449
    %1451 = vmatprep.subr.mxu0 0.0
    %v1452 = vand.u32 %v1446, 4294901760
    %1453 = vmatpush1.msra.mxu0 %v1452
    %1454 = vmatprep.subr.mxu0 0.0
    %v1455 = vand.u32 %v1445, 4294901760
    %1456 = vmatpush1.msra.mxu0 %v1455
    %1457 = vmatprep.subr.mxu0 0.0
    %v1458 = vand.u32 %v1444, 4294901760
    %1459 = vmatpush1.msra.mxu0 %v1458
    %1460 = vmatprep.subr.mxu0 0.0
    %v1461 = vand.u32 %v1443, 4294901760
    %1462 = vmatpush1.msra.mxu0 %v1461
    %1463 = vmatprep.subr.mxu0 0.0
    %v1464 = vand.u32 %v1442, 4294901760
    %1465 = vmatpush1.msra.mxu0 %v1464
    %1466 = vmatprep.subr.mxu0 0.0
    %v1467 = vand.u32 %v1441, 4294901760
    %1468 = vmatpush1.msra.mxu0 %v1467
    %1469 = vmatprep.subr.mxu0 0.0
    %v1470 = vand.u32 %v1440, 4294901760
    %1471 = vmatpush1.msra.mxu0 %v1470
    %1472 = vmatprep.subr.mxu0 0.0
    %v1473 = vand.u32 %v1439, 4294901760
    %1474 = vmatpush1.msra.mxu0 %v1473
    %1475 = vmatprep.subr.mxu0 0.0
    %v1476 = vand.u32 %v1438, 4294901760
    %1477 = vmatpush1.msra.mxu0 %v1476
    %1478 = vmatprep.subr.mxu0 0.0
    %v1479 = vand.u32 %v1437, 4294901760
    %1480 = vmatpush1.msra.mxu0 %v1479
    %1481 = vmatprep.subr.mxu0 0.0
    %v1482 = vand.u32 %v1436, 4294901760
    %1483 = vmatpush1.msra.mxu0 %v1482
    %1484 = vmatprep.subr.mxu0 0.0
    %v1485 = vand.u32 %v1435, 4294901760
    %1486 = vmatpush1.msra.mxu0 %v1485
    %1487 = vmatprep.subr.mxu0 0.0
    %v1488 = vand.u32 %v1434, 4294901760
    %1489 = vmatpush1.msra.mxu0 %v1488
    %1490 = vmatprep.subr.mxu0 0.0
    %v1491 = vand.u32 %v1433, 4294901760
    %1492 = vmatpush1.msra.mxu0 %v1491
    %1493 = vmatprep.subr.mxu0 0.0
    %v1494 = vand.u32 %v1432, 4294901760
    %1495 = vmatpush1.msra.mxu0 %v1494
    %1496 = vmatprep.subr.mxu0 0.0
    %1497 = vmatpush2.msra.mxu0 0.0
    %1498 = vmatprep.subr.mxu0 0.0
    %1499 = vmatpush2.msra.mxu0 0.0
    %1500 = vmatprep.subr.mxu0 0.0
    %1501 = vmatpush2.msra.mxu0 0.0
    %1502 = vmatprep.subr.mxu0 0.0
    %1503 = vmatpush2.msra.mxu0 0.0
    %1504 = vmatprep.subr.mxu0 0.0
    %1505 = vmatpush2.msra.mxu0 0.0
    %1506 = vmatprep.subr.mxu0 0.0
    %1507 = vmatpush2.msra.mxu0 0.0
    %1508 = vmatprep.subr.mxu0 0.0
    %1509 = vmatpush2.msra.mxu0 0.0
    %1510 = vmatprep.subr.mxu0 0.0
    %1511 = vmatpush2.msra.mxu0 0.0
    %1512 = vmatprep.subr.mxu0 0.0
    %1513 = vmatpush2.msra.mxu0 0.0
    %1514 = vmatprep.subr.mxu0 0.0
    %1515 = vmatpush2.msra.mxu0 0.0
    %1516 = vmatprep.subr.mxu0 0.0
    %1517 = vmatpush2.msra.mxu0 0.0
    %1518 = vmatprep.subr.mxu0 0.0
    %1519 = vmatpush2.msra.mxu0 0.0
    %1520 = vmatprep.subr.mxu0 0.0
    %1521 = vmatpush2.msra.mxu0 0.0
    %1522 = vmatprep.subr.mxu0 0.0
    %1523 = vmatpush2.msra.mxu0 0.0
    %1524 = vmatprep.subr.mxu0 0.0
    %1525 = vmatpush2.msra.mxu0 0.0
    %1526 = vmatprep.subr.mxu0 0.0
    %1527 = vmatpush2.msra.mxu0 0.0
    %1528 = vmatprep.mubr.f32.mxu0 0.0
    %v1529 = vand.u32 %v1430, 4294901760
    %v1530 = vsub.f32 %v1430, %v1529
    %v1531 = vand.u32 %v1530, 4294901760
    %v1532 = vsub.f32 %v1530, %v1531
    %v1533 = vand.u32 %v1532, 4294901760
    %1534 = vmatmul.mubr.f32.gmra.mxu0 %v1533
    %v1535 = vpop.f32.mrf.mxu0
    %v1536 = vadd.f32 0.0, %v1535
    %v1537 = vpop.f32.mrf.mxu0
    %1538 = vdwg.mxu0
    %1539 = vmatprep.subr.mxu0 0.0
    %v1540 = vand.u32 %v1447, 4294901760
    %v1541 = vsub.f32 %v1447, %v1540
    %v1542 = vand.u32 %v1541, 4294901760
    %v1543 = vsub.f32 %v1541, %v1542
    %v1544 = vand.u32 %v1543, 4294901760
    %1545 = vmatpush1.msra.mxu0 %v1544
    %1546 = vmatprep.subr.mxu0 0.0
    %v1547 = vand.u32 %v1446, 4294901760
    %v1548 = vsub.f32 %v1446, %v1547
    %v1549 = vand.u32 %v1548, 4294901760
    %v1550 = vsub.f32 %v1548, %v1549
    %v1551 = vand.u32 %v1550, 4294901760
    %1552 = vmatpush1.msra.mxu0 %v1551
    %1553 = vmatprep.subr.mxu0 0.0
    %v1554 = vand.u32 %v1445, 4294901760
    %v1555 = vsub.f32 %v1445, %v1554
    %v1556 = vand.u32 %v1555, 4294901760
    %v1557 = vsub.f32 %v1555, %v1556
    %v1558 = vand.u32 %v1557, 4294901760
    %1559 = vmatpush1.msra.mxu0 %v1558
    %1560 = vmatprep.subr.mxu0 0.0
    %v1561 = vand.u32 %v1444, 4294901760
    %v1562 = vsub.f32 %v1444, %v1561
    %v1563 = vand.u32 %v1562, 4294901760
    %v1564 = vsub.f32 %v1562, %v1563
    %v1565 = vand.u32 %v1564, 4294901760
    %1566 = vmatpush1.msra.mxu0 %v1565
    %1567 = vmatprep.subr.mxu0 0.0
    %v1568 = vand.u32 %v1443, 4294901760
    %v1569 = vsub.f32 %v1443, %v1568
    %v1570 = vand.u32 %v1569, 4294901760
    %v1571 = vsub.f32 %v1569, %v1570
    %v1572 = vand.u32 %v1571, 4294901760
    %1573 = vmatpush1.msra.mxu0 %v1572
    %1574 = vmatprep.subr.mxu0 0.0
    %v1575 = vand.u32 %v1442, 4294901760
    %v1576 = vsub.f32 %v1442, %v1575
    %v1577 = vand.u32 %v1576, 4294901760
    %v1578 = vsub.f32 %v1576, %v1577
    %v1579 = vand.u32 %v1578, 4294901760
    %1580 = vmatpush1.msra.mxu0 %v1579
    %1581 = vmatprep.subr.mxu0 0.0
    %v1582 = vand.u32 %v1441, 4294901760
    %v1583 = vsub.f32 %v1441, %v1582
    %v1584 = vand.u32 %v1583, 4294901760
    %v1585 = vsub.f32 %v1583, %v1584
    %v1586 = vand.u32 %v1585, 4294901760
    %1587 = vmatpush1.msra.mxu0 %v1586
    %1588 = vmatprep.subr.mxu0 0.0
    %v1589 = vand.u32 %v1440, 4294901760
    %v1590 = vsub.f32 %v1440, %v1589
    %v1591 = vand.u32 %v1590, 4294901760
    %v1592 = vsub.f32 %v1590, %v1591
    %v1593 = vand.u32 %v1592, 4294901760
    %1594 = vmatpush1.msra.mxu0 %v1593
    %1595 = vmatprep.subr.mxu0 0.0
    %v1596 = vand.u32 %v1439, 4294901760
    %v1597 = vsub.f32 %v1439, %v1596
    %v1598 = vand.u32 %v1597, 4294901760
    %v1599 = vsub.f32 %v1597, %v1598
    %v1600 = vand.u32 %v1599, 4294901760
    %1601 = vmatpush1.msra.mxu0 %v1600
    %1602 = vmatprep.subr.mxu0 0.0
    %v1603 = vand.u32 %v1438, 4294901760
    %v1604 = vsub.f32 %v1438, %v1603
    %v1605 = vand.u32 %v1604, 4294901760
    %v1606 = vsub.f32 %v1604, %v1605
    %v1607 = vand.u32 %v1606, 4294901760
    %1608 = vmatpush1.msra.mxu0 %v1607
    %1609 = vmatprep.subr.mxu0 0.0
    %v1610 = vand.u32 %v1437, 4294901760
    %v1611 = vsub.f32 %v1437, %v1610
    %v1612 = vand.u32 %v1611, 4294901760
    %v1613 = vsub.f32 %v1611, %v1612
    %v1614 = vand.u32 %v1613, 4294901760
    %1615 = vmatpush1.msra.mxu0 %v1614
    %1616 = vmatprep.subr.mxu0 0.0
    %v1617 = vand.u32 %v1436, 4294901760
    %v1618 = vsub.f32 %v1436, %v1617
    %v1619 = vand.u32 %v1618, 4294901760
    %v1620 = vsub.f32 %v1618, %v1619
    %v1621 = vand.u32 %v1620, 4294901760
    %1622 = vmatpush1.msra.mxu0 %v1621
    %1623 = vmatprep.subr.mxu0 0.0
    %v1624 = vand.u32 %v1435, 4294901760
    %v1625 = vsub.f32 %v1435, %v1624
    %v1626 = vand.u32 %v1625, 4294901760
    %v1627 = vsub.f32 %v1625, %v1626
    %v1628 = vand.u32 %v1627, 4294901760
    %1629 = vmatpush1.msra.mxu0 %v1628
    %1630 = vmatprep.subr.mxu0 0.0
    %v1631 = vand.u32 %v1434, 4294901760
    %v1632 = vsub.f32 %v1434, %v1631
    %v1633 = vand.u32 %v1632, 4294901760
    %v1634 = vsub.f32 %v1632, %v1633
    %v1635 = vand.u32 %v1634, 4294901760
    %1636 = vmatpush1.msra.mxu0 %v1635
    %1637 = vmatprep.subr.mxu0 0.0
    %v1638 = vand.u32 %v1433, 4294901760
    %v1639 = vsub.f32 %v1433, %v1638
    %v1640 = vand.u32 %v1639, 4294901760
    %v1641 = vsub.f32 %v1639, %v1640
    %v1642 = vand.u32 %v1641, 4294901760
    %1643 = vmatpush1.msra.mxu0 %v1642
    %1644 = vmatprep.subr.mxu0 0.0
    %v1645 = vand.u32 %v1432, 4294901760
    %v1646 = vsub.f32 %v1432, %v1645
    %v1647 = vand.u32 %v1646, 4294901760
    %v1648 = vsub.f32 %v1646, %v1647
    %v1649 = vand.u32 %v1648, 4294901760
    %1650 = vmatpush1.msra.mxu0 %v1649
    %1651 = vmatprep.subr.mxu0 0.0
    %1652 = vmatpush2.msra.mxu0 0.0
    %1653 = vmatprep.subr.mxu0 0.0
    %1654 = vmatpush2.msra.mxu0 0.0
    %1655 = vmatprep.subr.mxu0 0.0
    %1656 = vmatpush2.msra.mxu0 0.0
    %1657 = vmatprep.subr.mxu0 0.0
    %1658 = vmatpush2.msra.mxu0 0.0
    %1659 = vmatprep.subr.mxu0 0.0
    %1660 = vmatpush2.msra.mxu0 0.0
    %1661 = vmatprep.subr.mxu0 0.0
    %1662 = vmatpush2.msra.mxu0 0.0
    %1663 = vmatprep.subr.mxu0 0.0
    %1664 = vmatpush2.msra.mxu0 0.0
    %1665 = vmatprep.subr.mxu0 0.0
    %1666 = vmatpush2.msra.mxu0 0.0
    %1667 = vmatprep.subr.mxu0 0.0
    %1668 = vmatpush2.msra.mxu0 0.0
    %1669 = vmatprep.subr.mxu0 0.0
    %1670 = vmatpush2.msra.mxu0 0.0
    %1671 = vmatprep.subr.mxu0 0.0
    %1672 = vmatpush2.msra.mxu0 0.0
    %1673 = vmatprep.subr.mxu0 0.0
    %1674 = vmatpush2.msra.mxu0 0.0
    %1675 = vmatprep.subr.mxu0 0.0
    %1676 = vmatpush2.msra.mxu0 0.0
    %1677 = vmatprep.subr.mxu0 0.0
    %1678 = vmatpush2.msra.mxu0 0.0
    %1679 = vmatprep.subr.mxu0 0.0
    %1680 = vmatpush2.msra.mxu0 0.0
    %1681 = vmatprep.subr.mxu0 0.0
    %1682 = vmatpush2.msra.mxu0 0.0
    %1683 = vmatprep.mubr.f32.mxu0 0.0
    %v1684 = vand.u32 %v1430, 4294901760
    %1685 = vmatmul.mubr.f32.gmra.mxu0 %v1684
    %v1686 = vpop.f32.mrf.mxu0
    %v1687 = vadd.f32 %v1536, %v1686
    %v1688 = vpop.f32.mrf.mxu0
    %1689 = vdwg.mxu0
    %1690 = vmatprep.subr.mxu0 0.0
    %v1691 = vand.u32 %v1447, 4294901760
    %v1692 = vsub.f32 %v1447, %v1691
    %1693 = vmatpush1.msra.mxu0 %v1692
    %1694 = vmatprep.subr.mxu0 0.0
    %v1695 = vand.u32 %v1446, 4294901760
    %v1696 = vsub.f32 %v1446, %v1695
    %1697 = vmatpush1.msra.mxu0 %v1696
    %1698 = vmatprep.subr.mxu0 0.0
    %v1699 = vand.u32 %v1445, 4294901760
    %v1700 = vsub.f32 %v1445, %v1699
    %1701 = vmatpush1.msra.mxu0 %v1700
    %1702 = vmatprep.subr.mxu0 0.0
    %v1703 = vand.u32 %v1444, 4294901760
    %v1704 = vsub.f32 %v1444, %v1703
    %1705 = vmatpush1.msra.mxu0 %v1704
    %1706 = vmatprep.subr.mxu0 0.0
    %v1707 = vand.u32 %v1443, 4294901760
    %v1708 = vsub.f32 %v1443, %v1707
    %1709 = vmatpush1.msra.mxu0 %v1708
    %1710 = vmatprep.subr.mxu0 0.0
    %v1711 = vand.u32 %v1442, 4294901760
    %v1712 = vsub.f32 %v1442, %v1711
    %1713 = vmatpush1.msra.mxu0 %v1712
    %1714 = vmatprep.subr.mxu0 0.0
    %v1715 = vand.u32 %v1441, 4294901760
    %v1716 = vsub.f32 %v1441, %v1715
    %1717 = vmatpush1.msra.mxu0 %v1716
    %1718 = vmatprep.subr.mxu0 0.0
    %v1719 = vand.u32 %v1440, 4294901760
    %v1720 = vsub.f32 %v1440, %v1719
    %1721 = vmatpush1.msra.mxu0 %v1720
    %1722 = vmatprep.subr.mxu0 0.0
    %v1723 = vand.u32 %v1439, 4294901760
    %v1724 = vsub.f32 %v1439, %v1723
    %1725 = vmatpush1.msra.mxu0 %v1724
    %1726 = vmatprep.subr.mxu0 0.0
    %v1727 = vand.u32 %v1438, 4294901760
    %v1728 = vsub.f32 %v1438, %v1727
    %1729 = vmatpush1.msra.mxu0 %v1728
    %1730 = vmatprep.subr.mxu0 0.0
    %v1731 = vand.u32 %v1437, 4294901760
    %v1732 = vsub.f32 %v1437, %v1731
    %1733 = vmatpush1.msra.mxu0 %v1732
    %1734 = vmatprep.subr.mxu0 0.0
    %v1735 = vand.u32 %v1436, 4294901760
    %v1736 = vsub.f32 %v1436, %v1735
    %1737 = vmatpush1.msra.mxu0 %v1736
    %1738 = vmatprep.subr.mxu0 0.0
    %v1739 = vand.u32 %v1435, 4294901760
    %v1740 = vsub.f32 %v1435, %v1739
    %1741 = vmatpush1.msra.mxu0 %v1740
    %1742 = vmatprep.subr.mxu0 0.0
    %v1743 = vand.u32 %v1434, 4294901760
    %v1744 = vsub.f32 %v1434, %v1743
    %1745 = vmatpush1.msra.mxu0 %v1744
    %1746 = vmatprep.subr.mxu0 0.0
    %v1747 = vand.u32 %v1433, 4294901760
    %v1748 = vsub.f32 %v1433, %v1747
    %1749 = vmatpush1.msra.mxu0 %v1748
    %1750 = vmatprep.subr.mxu0 0.0
    %v1751 = vand.u32 %v1432, 4294901760
    %v1752 = vsub.f32 %v1432, %v1751
    %1753 = vmatpush1.msra.mxu0 %v1752
    %1754 = vmatprep.subr.mxu0 0.0
    %1755 = vmatpush2.msra.mxu0 0.0
    %1756 = vmatprep.subr.mxu0 0.0
    %1757 = vmatpush2.msra.mxu0 0.0
    %1758 = vmatprep.subr.mxu0 0.0
    %1759 = vmatpush2.msra.mxu0 0.0
    %1760 = vmatprep.subr.mxu0 0.0
    %1761 = vmatpush2.msra.mxu0 0.0
    %1762 = vmatprep.subr.mxu0 0.0
    %1763 = vmatpush2.msra.mxu0 0.0
    %1764 = vmatprep.subr.mxu0 0.0
    %1765 = vmatpush2.msra.mxu0 0.0
    %1766 = vmatprep.subr.mxu0 0.0
    %1767 = vmatpush2.msra.mxu0 0.0
    %1768 = vmatprep.subr.mxu0 0.0
    %1769 = vmatpush2.msra.mxu0 0.0
    %1770 = vmatprep.subr.mxu0 0.0
    %1771 = vmatpush2.msra.mxu0 0.0
    %1772 = vmatprep.subr.mxu0 0.0
    %1773 = vmatpush2.msra.mxu0 0.0
    %1774 = vmatprep.subr.mxu0 0.0
    %1775 = vmatpush2.msra.mxu0 0.0
    %1776 = vmatprep.subr.mxu0 0.0
    %1777 = vmatpush2.msra.mxu0 0.0
    %1778 = vmatprep.subr.mxu0 0.0
    %1779 = vmatpush2.msra.mxu0 0.0
    %1780 = vmatprep.subr.mxu0 0.0
    %1781 = vmatpush2.msra.mxu0 0.0
    %1782 = vmatprep.subr.mxu0 0.0
    %1783 = vmatpush2.msra.mxu0 0.0
    %1784 = vmatprep.subr.mxu0 0.0
    %1785 = vmatpush2.msra.mxu0 0.0
    %1786 = vmatprep.mubr.f32.mxu0 0.0
    %v1787 = vand.u32 %v1430, 4294901760
    %v1788 = vsub.f32 %v1430, %v1787
    %1789 = vmatmul.mubr.f32.gmra.mxu0 %v1788
    %v1790 = vpop.f32.mrf.mxu0
    %v1791 = vadd.f32 %v1687, %v1790
    %v1792 = vpop.f32.mrf.mxu0
    %1793 = vdwg.mxu0
    %1794 = vmatprep.subr.mxu0 0.0
    %v1795 = vand.u32 %v1447, 4294901760
    %1796 = vmatpush1.msra.mxu0 %v1795
    %1797 = vmatprep.subr.mxu0 0.0
    %v1798 = vand.u32 %v1446, 4294901760
    %1799 = vmatpush1.msra.mxu0 %v1798
    %1800 = vmatprep.subr.mxu0 0.0
    %v1801 = vand.u32 %v1445, 4294901760
    %1802 = vmatpush1.msra.mxu0 %v1801
    %1803 = vmatprep.subr.mxu0 0.0
    %v1804 = vand.u32 %v1444, 4294901760
    %1805 = vmatpush1.msra.mxu0 %v1804
    %1806 = vmatprep.subr.mxu0 0.0
    %v1807 = vand.u32 %v1443, 4294901760
    %1808 = vmatpush1.msra.mxu0 %v1807
    %1809 = vmatprep.subr.mxu0 0.0
    %v1810 = vand.u32 %v1442, 4294901760
    %1811 = vmatpush1.msra.mxu0 %v1810
    %1812 = vmatprep.subr.mxu0 0.0
    %v1813 = vand.u32 %v1441, 4294901760
    %1814 = vmatpush1.msra.mxu0 %v1813
    %1815 = vmatprep.subr.mxu0 0.0
    %v1816 = vand.u32 %v1440, 4294901760
    %1817 = vmatpush1.msra.mxu0 %v1816
    %1818 = vmatprep.subr.mxu0 0.0
    %v1819 = vand.u32 %v1439, 4294901760
    %1820 = vmatpush1.msra.mxu0 %v1819
    %1821 = vmatprep.subr.mxu0 0.0
    %v1822 = vand.u32 %v1438, 4294901760
    %1823 = vmatpush1.msra.mxu0 %v1822
    %1824 = vmatprep.subr.mxu0 0.0
    %v1825 = vand.u32 %v1437, 4294901760
    %1826 = vmatpush1.msra.mxu0 %v1825
    %1827 = vmatprep.subr.mxu0 0.0
    %v1828 = vand.u32 %v1436, 4294901760
    %1829 = vmatpush1.msra.mxu0 %v1828
    %1830 = vmatprep.subr.mxu0 0.0
    %v1831 = vand.u32 %v1435, 4294901760
    %1832 = vmatpush1.msra.mxu0 %v1831
    %1833 = vmatprep.subr.mxu0 0.0
    %v1834 = vand.u32 %v1434, 4294901760
    %1835 = vmatpush1.msra.mxu0 %v1834
    %1836 = vmatprep.subr.mxu0 0.0
    %v1837 = vand.u32 %v1433, 4294901760
    %1838 = vmatpush1.msra.mxu0 %v1837
    %1839 = vmatprep.subr.mxu0 0.0
    %v1840 = vand.u32 %v1432, 4294901760
    %1841 = vmatpush1.msra.mxu0 %v1840
    %1842 = vmatprep.subr.mxu0 0.0
    %1843 = vmatpush2.msra.mxu0 0.0
    %1844 = vmatprep.subr.mxu0 0.0
    %1845 = vmatpush2.msra.mxu0 0.0
    %1846 = vmatprep.subr.mxu0 0.0
    %1847 = vmatpush2.msra.mxu0 0.0
    %1848 = vmatprep.subr.mxu0 0.0
    %1849 = vmatpush2.msra.mxu0 0.0
    %1850 = vmatprep.subr.mxu0 0.0
    %1851 = vmatpush2.msra.mxu0 0.0
    %1852 = vmatprep.subr.mxu0 0.0
    %1853 = vmatpush2.msra.mxu0 0.0
    %1854 = vmatprep.subr.mxu0 0.0
    %1855 = vmatpush2.msra.mxu0 0.0
    %1856 = vmatprep.subr.mxu0 0.0
    %1857 = vmatpush2.msra.mxu0 0.0
    %1858 = vmatprep.subr.mxu0 0.0
    %1859 = vmatpush2.msra.mxu0 0.0
    %1860 = vmatprep.subr.mxu0 0.0
    %1861 = vmatpush2.msra.mxu0 0.0
    %1862 = vmatprep.subr.mxu0 0.0
    %1863 = vmatpush2.msra.mxu0 0.0
    %1864 = vmatprep.subr.mxu0 0.0
    %1865 = vmatpush2.msra.mxu0 0.0
    %1866 = vmatprep.subr.mxu0 0.0
    %1867 = vmatpush2.msra.mxu0 0.0
    %1868 = vmatprep.subr.mxu0 0.0
    %1869 = vmatpush2.msra.mxu0 0.0
    %1870 = vmatprep.subr.mxu0 0.0
    %1871 = vmatpush2.msra.mxu0 0.0
    %1872 = vmatprep.subr.mxu0 0.0
    %1873 = vmatpush2.msra.mxu0 0.0
    %1874 = vmatprep.mubr.f32.mxu0 0.0
    %v1875 = vand.u32 %v1430, 4294901760
    %v1876 = vsub.f32 %v1430, %v1875
    %v1877 = vand.u32 %v1876, 4294901760
    %1878 = vmatmul.mubr.f32.gmra.mxu0 %v1877
    %v1879 = vpop.f32.mrf.mxu0
    %v1880 = vadd.f32 %v1791, %v1879
    %v1881 = vpop.f32.mrf.mxu0
    %1882 = vdwg.mxu0
    %1883 = vmatprep.subr.mxu0 0.0
    %v1884 = vand.u32 %v1447, 4294901760
    %v1885 = vsub.f32 %v1447, %v1884
    %v1886 = vand.u32 %v1885, 4294901760
    %1887 = vmatpush1.msra.mxu0 %v1886
    %1888 = vmatprep.subr.mxu0 0.0
    %v1889 = vand.u32 %v1446, 4294901760
    %v1890 = vsub.f32 %v1446, %v1889
    %v1891 = vand.u32 %v1890, 4294901760
    %1892 = vmatpush1.msra.mxu0 %v1891
    %1893 = vmatprep.subr.mxu0 0.0
    %v1894 = vand.u32 %v1445, 4294901760
    %v1895 = vsub.f32 %v1445, %v1894
    %v1896 = vand.u32 %v1895, 4294901760
    %1897 = vmatpush1.msra.mxu0 %v1896
    %1898 = vmatprep.subr.mxu0 0.0
    %v1899 = vand.u32 %v1444, 4294901760
    %v1900 = vsub.f32 %v1444, %v1899
    %v1901 = vand.u32 %v1900, 4294901760
    %1902 = vmatpush1.msra.mxu0 %v1901
    %1903 = vmatprep.subr.mxu0 0.0
    %v1904 = vand.u32 %v1443, 4294901760
    %v1905 = vsub.f32 %v1443, %v1904
    %v1906 = vand.u32 %v1905, 4294901760
    %1907 = vmatpush1.msra.mxu0 %v1906
    %1908 = vmatprep.subr.mxu0 0.0
    %v1909 = vand.u32 %v1442, 4294901760
    %v1910 = vsub.f32 %v1442, %v1909
    %v1911 = vand.u32 %v1910, 4294901760
    %1912 = vmatpush1.msra.mxu0 %v1911
    %1913 = vmatprep.subr.mxu0 0.0
    %v1914 = vand.u32 %v1441, 4294901760
    %v1915 = vsub.f32 %v1441, %v1914
    %v1916 = vand.u32 %v1915, 4294901760
    %1917 = vmatpush1.msra.mxu0 %v1916
    %1918 = vmatprep.subr.mxu0 0.0
    %v1919 = vand.u32 %v1440, 4294901760
    %v1920 = vsub.f32 %v1440, %v1919
    %v1921 = vand.u32 %v1920, 4294901760
    %1922 = vmatpush1.msra.mxu0 %v1921
    %1923 = vmatprep.subr.mxu0 0.0
    %v1924 = vand.u32 %v1439, 4294901760
    %v1925 = vsub.f32 %v1439, %v1924
    %v1926 = vand.u32 %v1925, 4294901760
    %1927 = vmatpush1.msra.mxu0 %v1926
    %1928 = vmatprep.subr.mxu0 0.0
    %v1929 = vand.u32 %v1438, 4294901760
    %v1930 = vsub.f32 %v1438, %v1929
    %v1931 = vand.u32 %v1930, 4294901760
    %1932 = vmatpush1.msra.mxu0 %v1931
    %1933 = vmatprep.subr.mxu0 0.0
    %v1934 = vand.u32 %v1437, 4294901760
    %v1935 = vsub.f32 %v1437, %v1934
    %v1936 = vand.u32 %v1935, 4294901760
    %1937 = vmatpush1.msra.mxu0 %v1936
    %1938 = vmatprep.subr.mxu0 0.0
    %v1939 = vand.u32 %v1436, 4294901760
    %v1940 = vsub.f32 %v1436, %v1939
    %v1941 = vand.u32 %v1940, 4294901760
    %1942 = vmatpush1.msra.mxu0 %v1941
    %1943 = vmatprep.subr.mxu0 0.0
    %v1944 = vand.u32 %v1435, 4294901760
    %v1945 = vsub.f32 %v1435, %v1944
    %v1946 = vand.u32 %v1945, 4294901760
    %1947 = vmatpush1.msra.mxu0 %v1946
    %1948 = vmatprep.subr.mxu0 0.0
    %v1949 = vand.u32 %v1434, 4294901760
    %v1950 = vsub.f32 %v1434, %v1949
    %v1951 = vand.u32 %v1950, 4294901760
    %1952 = vmatpush1.msra.mxu0 %v1951
    %1953 = vmatprep.subr.mxu0 0.0
    %v1954 = vand.u32 %v1433, 4294901760
    %v1955 = vsub.f32 %v1433, %v1954
    %v1956 = vand.u32 %v1955, 4294901760
    %1957 = vmatpush1.msra.mxu0 %v1956
    %1958 = vmatprep.subr.mxu0 0.0
    %v1959 = vand.u32 %v1432, 4294901760
    %v1960 = vsub.f32 %v1432, %v1959
    %v1961 = vand.u32 %v1960, 4294901760
    %1962 = vmatpush1.msra.mxu0 %v1961
    %1963 = vmatprep.subr.mxu0 0.0
    %1964 = vmatpush2.msra.mxu0 0.0
    %1965 = vmatprep.subr.mxu0 0.0
    %1966 = vmatpush2.msra.mxu0 0.0
    %1967 = vmatprep.subr.mxu0 0.0
    %1968 = vmatpush2.msra.mxu0 0.0
    %1969 = vmatprep.subr.mxu0 0.0
    %1970 = vmatpush2.msra.mxu0 0.0
    %1971 = vmatprep.subr.mxu0 0.0
    %1972 = vmatpush2.msra.mxu0 0.0
    %1973 = vmatprep.subr.mxu0 0.0
    %1974 = vmatpush2.msra.mxu0 0.0
    %1975 = vmatprep.subr.mxu0 0.0
    %1976 = vmatpush2.msra.mxu0 0.0
    %1977 = vmatprep.subr.mxu0 0.0
    %1978 = vmatpush2.msra.mxu0 0.0
    %1979 = vmatprep.subr.mxu0 0.0
    %1980 = vmatpush2.msra.mxu0 0.0
    %1981 = vmatprep.subr.mxu0 0.0
    %1982 = vmatpush2.msra.mxu0 0.0
    %1983 = vmatprep.subr.mxu0 0.0
    %1984 = vmatpush2.msra.mxu0 0.0
    %1985 = vmatprep.subr.mxu0 0.0
    %1986 = vmatpush2.msra.mxu0 0.0
    %1987 = vmatprep.subr.mxu0 0.0
    %1988 = vmatpush2.msra.mxu0 0.0
    %1989 = vmatprep.subr.mxu0 0.0
    %1990 = vmatpush2.msra.mxu0 0.0
    %1991 = vmatprep.subr.mxu0 0.0
    %1992 = vmatpush2.msra.mxu0 0.0
    %1993 = vmatprep.subr.mxu0 0.0
    %1994 = vmatpush2.msra.mxu0 0.0
    %1995 = vmatprep.mubr.f32.mxu0 0.0
    %v1996 = vand.u32 %v1430, 4294901760
    %1997 = vmatmul.mubr.f32.gmra.mxu0 %v1996
    %v1998 = vpop.f32.mrf.mxu0
    %v1999 = vadd.f32 %v1880, %v1998
    %v2000 = vpop.f32.mrf.mxu0
    %2001 = vdwg.mxu0
    %2002 = vmatprep.subr.mxu0 0.0
    %v2003 = vand.u32 %v1447, 4294901760
    %2004 = vmatpush1.msra.mxu0 %v2003
    %2005 = vmatprep.subr.mxu0 0.0
    %v2006 = vand.u32 %v1446, 4294901760
    %2007 = vmatpush1.msra.mxu0 %v2006
    %2008 = vmatprep.subr.mxu0 0.0
    %v2009 = vand.u32 %v1445, 4294901760
    %2010 = vmatpush1.msra.mxu0 %v2009
    %2011 = vmatprep.subr.mxu0 0.0
    %v2012 = vand.u32 %v1444, 4294901760
    %2013 = vmatpush1.msra.mxu0 %v2012
    %2014 = vmatprep.subr.mxu0 0.0
    %v2015 = vand.u32 %v1443, 4294901760
    %2016 = vmatpush1.msra.mxu0 %v2015
    %2017 = vmatprep.subr.mxu0 0.0
    %v2018 = vand.u32 %v1442, 4294901760
    %2019 = vmatpush1.msra.mxu0 %v2018
    %2020 = vmatprep.subr.mxu0 0.0
    %v2021 = vand.u32 %v1441, 4294901760
    %2022 = vmatpush1.msra.mxu0 %v2021
    %2023 = vmatprep.subr.mxu0 0.0
    %v2024 = vand.u32 %v1440, 4294901760
    %2025 = vmatpush1.msra.mxu0 %v2024
    %2026 = vmatprep.subr.mxu0 0.0
    %v2027 = vand.u32 %v1439, 4294901760
    %2028 = vmatpush1.msra.mxu0 %v2027
    %2029 = vmatprep.subr.mxu0 0.0
    %v2030 = vand.u32 %v1438, 4294901760
    %2031 = vmatpush1.msra.mxu0 %v2030
    %2032 = vmatprep.subr.mxu0 0.0
    %v2033 = vand.u32 %v1437, 4294901760
    %2034 = vmatpush1.msra.mxu0 %v2033
    %2035 = vmatprep.subr.mxu0 0.0
    %v2036 = vand.u32 %v1436, 4294901760
    %2037 = vmatpush1.msra.mxu0 %v2036
    %2038 = vmatprep.subr.mxu0 0.0
    %v2039 = vand.u32 %v1435, 4294901760
    %2040 = vmatpush1.msra.mxu0 %v2039
    %2041 = vmatprep.subr.mxu0 0.0
    %v2042 = vand.u32 %v1434, 4294901760
    %2043 = vmatpush1.msra.mxu0 %v2042
    %2044 = vmatprep.subr.mxu0 0.0
    %v2045 = vand.u32 %v1433, 4294901760
    %2046 = vmatpush1.msra.mxu0 %v2045
    %2047 = vmatprep.subr.mxu0 0.0
    %v2048 = vand.u32 %v1432, 4294901760
    %2049 = vmatpush1.msra.mxu0 %v2048
    %2050 = vmatprep.subr.mxu0 0.0
    %2051 = vmatpush2.msra.mxu0 0.0
    %2052 = vmatprep.subr.mxu0 0.0
    %2053 = vmatpush2.msra.mxu0 0.0
    %2054 = vmatprep.subr.mxu0 0.0
    %2055 = vmatpush2.msra.mxu0 0.0
    %2056 = vmatprep.subr.mxu0 0.0
    %2057 = vmatpush2.msra.mxu0 0.0
    %2058 = vmatprep.subr.mxu0 0.0
    %2059 = vmatpush2.msra.mxu0 0.0
    %2060 = vmatprep.subr.mxu0 0.0
    %2061 = vmatpush2.msra.mxu0 0.0
    %2062 = vmatprep.subr.mxu0 0.0
    %2063 = vmatpush2.msra.mxu0 0.0
    %2064 = vmatprep.subr.mxu0 0.0
    %2065 = vmatpush2.msra.mxu0 0.0
    %2066 = vmatprep.subr.mxu0 0.0
    %2067 = vmatpush2.msra.mxu0 0.0
    %2068 = vmatprep.subr.mxu0 0.0
    %2069 = vmatpush2.msra.mxu0 0.0
    %2070 = vmatprep.subr.mxu0 0.0
    %2071 = vmatpush2.msra.mxu0 0.0
    %2072 = vmatprep.subr.mxu0 0.0
    %2073 = vmatpush2.msra.mxu0 0.0
    %2074 = vmatprep.subr.mxu0 0.0
    %2075 = vmatpush2.msra.mxu0 0.0
    %2076 = vmatprep.subr.mxu0 0.0
    %2077 = vmatpush2.msra.mxu0 0.0
    %2078 = vmatprep.subr.mxu0 0.0
    %2079 = vmatpush2.msra.mxu0 0.0
    %2080 = vmatprep.subr.mxu0 0.0
    %2081 = vmatpush2.msra.mxu0 0.0
    %2082 = vmatprep.mubr.f32.mxu0 0.0
    %v2083 = vand.u32 %v1430, 4294901760
    %2084 = vmatmul.mubr.f32.gmra.mxu0 %v2083
    %v2085 = vpop.f32.mrf.mxu0
    %v2086 = vadd.f32 %v1999, %v2085
    %v2087 = vpop.f32.mrf.mxu0
    %2088 = vdwg.mxu0
    %s2089 = sld [smem:[#allocation2 + $0x2]]
    %s2090 = ssub.f32 %s2089, 1.0
    %v2091 = vstv %s2090
    %v2092 = vadd.f32 %v2091, %v2086
    %v2093 = vmin.f32 %v2092, 1.0
    %v2094 = vmax.f32 %v2093, 0.0
    %s2095 = sld [smem:[#allocation2 + $0x6]]
    %v2096 = vstv %s2095
    %v2097 = vmul.f32 %v2096, %v2094
    %v2098 = vadd.f32 %v1411, %v2097
    %s2099 = sld [smem:[#allocation2 + $0x3]]
    %s2100 = ssub.f32 %s2099, 1.0
    %v2101 = vstv %s2100
    %v2102 = vadd.f32 %v2101, %v2098
    %v2103 = vmin.f32 %v2102, 1.0
    %v2104 = vmax.f32 %v2103, 0.0
    %vm2105 = vcmask 64512
    %2106 = vst.msk [vmem:[#allocation5] sm:$0xff] %vm2105, %v2104
    // Predicated region
    $region34: #{tpu_custom_call.1} parent=1 // pred_check
      _
    $region35: #{tpu_custom_call.1} parent=1 // pred_check_branch
      %2108 = sbr.rel (0) target = $region37
    $region36: #{tpu_custom_call.1} parent=1 // pred_region
      %s2110 = ssub.s32 128, 16
      %2111 = vsyncadd [#allocation3], %s2110
      %s2112 = sshll.u32 [#allocation5], 4
      %s2113 = int_to_ptr.vmem [resolvable:$true] %s2112
      %2118 = dma.vmem_to_hbm [thread:$0]  %s2113, 16, %s7, [#allocation3], 16, 16, 1
    $region37: #{tpu_custom_call.1} parent=1 // pred_fallthru
      _
    // Predicated region
    $region38: #{tpu_custom_call.1} parent=1 // pred_check
      _
    $region39: #{tpu_custom_call.1} parent=1 // pred_check_branch
      %2120 = sbr.rel (0) target = $region41
    $region40: #{tpu_custom_call.1} parent=1 // pred_region
      %2121 = dma.done [#allocation3], 128
    $region41: #{tpu_custom_call.1} parent=1 // pred_fallthru
      _
    %2122 = vsyncpa [#allocation3], 1
    %2123 = vsyncpa [#allocation4], 1

</llo_original>
